<compile_context>
chip_gen: v6e
topology: v6e:2x2x1
jax: 0.10.0
libtpu: 0.0.40
codegen_flags: <defaults>
</compile_context>

<pallas_src>
import functools
import math

import jax
import jax.numpy as jnp
from jax import lax
from jax.experimental import pallas as pl
from jax.experimental.pallas import tpu as pltpu


LN_EPS = 1e-5  # matches torch.nn.LayerNorm default

# Row layout of the packed (L, 9, E) per-layer vector table.
_BQ, _BK, _BV, _BO, _G1, _BE1, _BF2, _G2, _BE2 = range(9)


def _layer_norm(z, gamma, beta):
    mu = jnp.mean(z, axis=-1, keepdims=True)
    var = jnp.mean(jnp.square(z - mu), axis=-1, keepdims=True)
    return (z - mu) * lax.rsqrt(var + LN_EPS) * gamma + beta


# ----------------------------------------------------------------------------
# Pallas kernel: all TransformerBlocks for one batch tile.
# Grid = (B // Bt, L); the output block (index depends only on the batch axis)
# is the resident activation carried across the layer axis.
# ----------------------------------------------------------------------------
def encoder_layers_kernel(
    x_ref, bias_ref,
    wqkv_ref, wo_ref, w1_ref, w2_ref, vece_ref, vech_ref,
    out_ref,
    *, heads, batch_tile,
):
    l = pl.program_id(1)

    # Seed the resident activation from the embedded input at layer 0.
    @pl.when(l == 0)
    def _():
        out_ref[...] = x_ref[...]

    M, E = out_ref.shape                 # M = Bt * S
    Bt = batch_tile
    S = M // Bt
    dh = E // heads

    x = out_ref[...]                     # (M, E) f32: output of previous layer

    vece = vece_ref[0]                   # (9, E)
    bq, bk, bv = vece[_BQ:_BQ + 1], vece[_BK:_BK + 1], vece[_BV:_BV + 1]
    bo = vece[_BO:_BO + 1]
    g1, be1 = vece[_G1:_G1 + 1], vece[_BE1:_BE1 + 1]
    bf2 = vece[_BF2:_BF2 + 1]
    g2, be2 = vece[_G2:_G2 + 1], vece[_BE2:_BE2 + 1]
    bf1 = vech_ref[0]                    # (1, H)

    # --- fused QKV projection (scale already folded into wq / bq) --------
    x_bf = x.astype(jnp.bfloat16)
    qkv = jnp.dot(x_bf, wqkv_ref[0], preferred_element_type=jnp.float32)  # (M, 3E)
    q_bf = (qkv[:, 0:E] + bq).astype(jnp.bfloat16)
    k_bf = (qkv[:, E:2 * E] + bk).astype(jnp.bfloat16)
    v_bf = (qkv[:, 2 * E:3 * E] + bv).astype(jnp.bfloat16)

    # --- per-(batch element, head) scaled dot-product attention ----------
    # Bt and heads are small static constants -> fully unrolled.
    ctx_rows = []
    for b in range(Bt):
        bias_row = bias_ref[b]           # (1, S) additive key mask (0 / -1e9)
        r0 = b * S
        head_ctx = []
        for h in range(heads):
            c0 = h * dh
            qh = q_bf[r0:r0 + S, c0:c0 + dh]
            kh = k_bf[r0:r0 + S, c0:c0 + dh]
            vh = v_bf[r0:r0 + S, c0:c0 + dh]
            s = jnp.dot(qh, kh.T, preferred_element_type=jnp.float32) + bias_row
            m = jnp.max(s, axis=-1, keepdims=True)
            p = jnp.exp(s - m)
            denom = jnp.sum(p, axis=-1, keepdims=True)
            ch = jnp.dot(p.astype(jnp.bfloat16), vh,
                         preferred_element_type=jnp.float32)       # (S, dh)
            # normalize the (S, dh) context, not the (S, S) probabilities
            head_ctx.append(ch * pl.reciprocal(denom, approx=True))
        ctx_rows.append(jnp.concatenate(head_ctx, axis=-1))
    ctx = jnp.concatenate(ctx_rows, axis=0)                         # (M, E) f32

    # Single out-projection over the concatenated heads: contraction K = E.
    attn = jnp.dot(ctx.astype(jnp.bfloat16), wo_ref[0],
                   preferred_element_type=jnp.float32) + bo

    # --- residual + LayerNorm (dropout = identity at inference) ----------
    y1 = _layer_norm(x + attn, g1, be1)

    # --- position-wise feed forward: Linear -> ReLU -> Linear ------------
    h1 = jnp.maximum(
        jnp.dot(y1.astype(jnp.bfloat16), w1_ref[0],
                preferred_element_type=jnp.float32) + bf1, 0.0)
    ff = jnp.dot(h1.astype(jnp.bfloat16), w2_ref[0],
                 preferred_element_type=jnp.float32) + bf2

    out_ref[...] = _layer_norm(y1 + ff, g2, be2)


# ----------------------------------------------------------------------------
# Wrapper: one pallas_call for ALL layers, grid over (batch tiles, layer).
# ----------------------------------------------------------------------------
def encoder_layers(x, key_bias, params, heads):
    B, S, E = x.shape
    L = params["wqkv"].shape[0]
    H = params["w1"].shape[2]

    # Largest divisor of B with Bt*S <= 128 rows -> fills the MXU M dimension
    # and amortizes each layer-weight DMA over the whole tile.
    Bt = 1
    for cand in range(1, B + 1):
        if B % cand == 0 and cand * S <= 128:
            Bt = cand
    nb = B // Bt
    M = Bt * S

    x_flat = x.reshape(B * S, E)

    # --- advisory cost estimate for XLA scheduling around the custom call ---
    flops = L * (8 * B * S * E * E + 4 * B * S * E * H + 4 * B * S * S * E)
    transcendentals = L * (B * heads * S * S + B * S * (heads + 2))
    w_bytes_layer = (3 * E * E + E * E + 2 * E * H) * 2 + (9 * E + H) * 4
    bytes_accessed = (2 * B * S * E * 4          # activations in + out
                      + B * S * 4                # key-mask bias
                      + nb * L * w_bytes_layer)  # weights streamed per batch tile

    # --- explicit VMEM budget (double-buffered weights + activation blocks) ---
    vmem_est = (2 * w_bytes_layer + 8 * M * E * 4 + 2 * M * H * 4
                + 2 * Bt * S * 4 + (1 << 22))
    # 64 MiB cap keeps this valid on v7x; raise toward 128 MiB on v5e/v6e for
    # production shapes.
    vmem_limit = int(min(max(vmem_est, 32 << 20), 64 << 20))

    kernel = functools.partial(encoder_layers_kernel, heads=heads,
                               batch_tile=Bt)
    out_flat = pl.pallas_call(
        kernel,
        out_shape=jax.ShapeDtypeStruct((B * S, E), jnp.float32),
        grid=(nb, L),
        in_specs=[
            pl.BlockSpec((M, E), lambda b, l: (b, 0)),        # embedded input
            pl.BlockSpec((Bt, 1, S), lambda b, l: (b, 0, 0)),  # additive key mask
            pl.BlockSpec((1, E, 3 * E), lambda b, l: (l, 0, 0)),  # fused Wqkv
            pl.BlockSpec((1, E, E), lambda b, l: (l, 0, 0)),      # Wo
            pl.BlockSpec((1, E, H), lambda b, l: (l, 0, 0)),      # FF W1
            pl.BlockSpec((1, H, E), lambda b, l: (l, 0, 0)),      # FF W2
            pl.BlockSpec((1, 9, E), lambda b, l: (l, 0, 0)),      # packed E-vectors
            pl.BlockSpec((1, 1, H), lambda b, l: (l, 0, 0)),      # packed H-vector
        ],
        out_specs=pl.BlockSpec((M, E), lambda b, l: (b, 0)),
        compiler_params=pltpu.CompilerParams(
            dimension_semantics=("parallel", "arbitrary"),
            vmem_limit_bytes=vmem_limit),
        cost_estimate=pl.CostEstimate(
            flops=flops,
            transcendentals=transcendentals,
            bytes_accessed=bytes_accessed),
    )(
        x_flat, key_bias,
        params["wqkv"], params["wo"], params["w1"], params["w2"],
        params["vec_e"], params["vec_h"],
    )
    return out_flat.reshape(B, S, E)


# ----------------------------------------------------------------------------
# Parameter init (stacked over layers) + glue (embedding, positional encoding).
# ----------------------------------------------------------------------------
def _init_layer_params(key, E, H, heads):
    ks = jax.random.split(key, 6)
    std = 0.02
    f32, bf = jnp.float32, jnp.bfloat16
    dh = E // heads
    scale = 1.0 / math.sqrt(dh)

    wq = std * jax.random.normal(ks[0], (E, E), f32)
    wk = std * jax.random.normal(ks[1], (E, E), f32)
    wv = std * jax.random.normal(ks[2], (E, E), f32)
    wo = std * jax.random.normal(ks[3], (E, E), f32)
    w1 = std * jax.random.normal(ks[4], (E, H), f32)
    w2 = std * jax.random.normal(ks[5], (H, E), f32)

    bq = jnp.zeros((E,), f32)
    bk = jnp.zeros((E,), f32)
    bv = jnp.zeros((E,), f32)
    bo = jnp.zeros((E,), f32)
    g1, be1 = jnp.ones((E,), f32), jnp.zeros((E,), f32)
    bf1 = jnp.zeros((H,), f32)
    bf2 = jnp.zeros((E,), f32)
    g2, be2 = jnp.ones((E,), f32), jnp.zeros((E,), f32)

    # Fold 1/sqrt(head_dim) into the query projection; fuse Q/K/V into one
    # (E, 3E) bf16 matrix (MXU-input weights in bf16, f32 accumulation).
    wqkv = jnp.concatenate([wq * scale, wk, wv], axis=-1).astype(bf)

    vec_e = jnp.stack([bq * scale, bk, bv, bo, g1, be1, bf2, g2, be2], axis=0)
    vec_h = bf1.reshape(1, H)

    return {
        "wqkv": wqkv,
        "wo": wo.astype(bf),
        "w1": w1.astype(bf),
        "w2": w2.astype(bf),
        "vec_e": vec_e,          # (9, E) float32
        "vec_h": vec_h,          # (1, H) float32
    }


def init_stacked_params(key, num_layers, embed_size, heads, forward_expansion):
    E = embed_size
    assert E % heads == 0, "embed_size must be divisible by heads"
    H = forward_expansion * E
    keys = jax.random.split(key, num_layers)
    per_layer = [_init_layer_params(k, E, H, heads) for k in keys]
    return {name: jnp.stack([p[name] for p in per_layer], axis=0)
            for name in per_layer[0]}


def sinusoidal_positional_encoding(max_length, embed_size):
    pos = jnp.arange(max_length, dtype=jnp.float32)[:, None]
    i = jnp.arange(embed_size, dtype=jnp.float32)[None, :]
    angle = pos / jnp.power(10000.0, (2.0 * jnp.floor(i / 2.0)) / embed_size)
    return jnp.where(jnp.arange(embed_size)[None, :] % 2 == 0,
                     jnp.sin(angle), jnp.cos(angle))


def encoder_forward(src, src_key_mask, emb_table, pe_table, params, heads):
    """src: (B, S) int32 token ids.
    src_key_mask: (B, S) key-validity mask (nonzero = attend, 0 = masked);
    this is the canonical encoder src_mask broadcast over query positions."""
    B, S = src.shape
    # glue: embedding gather + positional encoding (dropout = identity, eval)
    out = emb_table[src] + pe_table[:S][None, :, :]
    # additive attention bias: 0 where valid, -1e9 where masked
    key_bias = jnp.where(src_key_mask != 0, 0.0, -1e9).astype(jnp.float32)
    key_bias = key_bias.reshape(B, 1, S)
    return encoder_layers(out, key_bias, params, heads)


# ----------------------------------------------------------------------------
if __name__ == "__main__":
    src_vocab_size = 50
    embed_size = 32
    num_layers = 2
    heads = 4
    forward_expansion = 4
    max_length = 16
    B, S = 2, 8

    key = jax.random.PRNGKey(0)
    k_emb, k_src, k_layers = jax.random.split(key, 3)

    emb_table = 0.02 * jax.random.normal(
        k_emb, (src_vocab_size, embed_size), jnp.float32)
    pe_table = sinusoidal_positional_encoding(max_length, embed_size)
    params = init_stacked_params(k_layers, num_layers, embed_size, heads,
                                 forward_expansion)

    src = jax.random.randint(k_src, (B, S), 0, src_vocab_size, dtype=jnp.int32)
    lengths = jnp.array([8, 6], dtype=jnp.int32)
    src_key_mask = (jnp.arange(S)[None, :] < lengths[:, None]).astype(jnp.float32)

    out = encoder_forward(src, src_key_mask, emb_table, pe_table, params, heads)
    out = jax.block_until_ready(out)
    assert out.shape == (B, S, embed_size)
    assert bool(jnp.all(jnp.isfinite(out)))
    print("KERNEL_OK")
</pallas_src>

<mosaic_0001>
module attributes {stable_mosaic.version = 11 : i64} {
  func.func @encoder_layers_kernel(%arg0: i32, %arg1: i32, %arg2: memref<16x32xf32, #tpu.memory_space<vmem>>, %arg3: memref<2x1x8xf32, #tpu.memory_space<vmem>>, %arg4: memref<1x32x96xbf16, #tpu.memory_space<vmem>>, %arg5: memref<1x32x32xbf16, #tpu.memory_space<vmem>>, %arg6: memref<1x32x128xbf16, #tpu.memory_space<vmem>>, %arg7: memref<1x128x32xbf16, #tpu.memory_space<vmem>>, %arg8: memref<1x9x32xf32, #tpu.memory_space<vmem>>, %arg9: memref<1x1x128xf32, #tpu.memory_space<vmem>>, %arg10: memref<16x32xf32, #tpu.memory_space<vmem>>) attributes {dimension_semantics = [#tpu.dimension_semantics<parallel>, #tpu.dimension_semantics<arbitrary>], iteration_bounds = array<i64: 1, 2>, scalar_prefetch = 0 : i64, scratch_operands = 0 : i64, tpu.core_type = #tpu.core_type<tc>, window_params = [{transform_indices = @transform_0, window_bounds = array<i64: 16, 32>}, {transform_indices = @transform_1, window_bounds = array<i64: 2, 1, 8>}, {transform_indices = @transform_2, window_bounds = array<i64: 1, 32, 96>}, {transform_indices = @transform_3, window_bounds = array<i64: 1, 32, 32>}, {transform_indices = @transform_4, window_bounds = array<i64: 1, 32, 128>}, {transform_indices = @transform_5, window_bounds = array<i64: 1, 128, 32>}, {transform_indices = @transform_6, window_bounds = array<i64: 1, 9, 32>}, {transform_indices = @transform_7, window_bounds = array<i64: 1, 1, 128>}, {transform_indices = @transform_8, window_bounds = array<i64: 16, 32>}]} {
    %c0_i32 = arith.constant 0 : i32
    %0 = arith.cmpi eq, %arg1, %c0_i32 : i32
    %1 = arith.extui %0 : i1 to i32
    %c0_i32_0 = arith.constant 0 : i32
    %2 = arith.cmpi ne, %1, %c0_i32_0 : i32
    scf.if %2 {
      %c0_73 = arith.constant 0 : index
      %c0_74 = arith.constant 0 : index
      %259 = vector.load %arg2[%c0_73, %c0_74] : memref<16x32xf32, #tpu.memory_space<vmem>>, vector<16x32xf32>
      %c0_75 = arith.constant 0 : index
      %c0_76 = arith.constant 0 : index
      %260 = vector.load %arg10[%c0_75, %c0_76] : memref<16x32xf32, #tpu.memory_space<vmem>>, vector<16x32xf32>
      tpu.vector_store %arg10[%c0_75, %c0_76], %259 {strides = array<i32>} : memref<16x32xf32, #tpu.memory_space<vmem>>, vector<16x32xf32>,
    } else {
    }
    %c0 = arith.constant 0 : index
    %c0_1 = arith.constant 0 : index
    %3 = vector.load %arg10[%c0, %c0_1] : memref<16x32xf32, #tpu.memory_space<vmem>>, vector<16x32xf32>
    %c0_2 = arith.constant 0 : index
    %c0_3 = arith.constant 0 : index
    %c0_4 = arith.constant 0 : index
    %4 = vector.load %arg8[%c0_2, %c0_3, %c0_4] : memref<1x9x32xf32, #tpu.memory_space<vmem>>, vector<1x9x32xf32>
    %5 = vector.shape_cast %4 : vector<1x9x32xf32> to vector<9x32xf32>
    %6 = vector.extract_strided_slice %5 {offsets = [0, 0], sizes = [1, 32], strides = [1, 1]} : vector<9x32xf32> to vector<1x32xf32>
    %7 = vector.extract_strided_slice %5 {offsets = [1, 0], sizes = [1, 32], strides = [1, 1]} : vector<9x32xf32> to vector<1x32xf32>
    %8 = vector.extract_strided_slice %5 {offsets = [2, 0], sizes = [1, 32], strides = [1, 1]} : vector<9x32xf32> to vector<1x32xf32>
    %9 = vector.extract_strided_slice %5 {offsets = [3, 0], sizes = [1, 32], strides = [1, 1]} : vector<9x32xf32> to vector<1x32xf32>
    %10 = vector.extract_strided_slice %5 {offsets = [4, 0], sizes = [1, 32], strides = [1, 1]} : vector<9x32xf32> to vector<1x32xf32>
    %11 = vector.extract_strided_slice %5 {offsets = [5, 0], sizes = [1, 32], strides = [1, 1]} : vector<9x32xf32> to vector<1x32xf32>
    %12 = vector.extract_strided_slice %5 {offsets = [6, 0], sizes = [1, 32], strides = [1, 1]} : vector<9x32xf32> to vector<1x32xf32>
    %13 = vector.extract_strided_slice %5 {offsets = [7, 0], sizes = [1, 32], strides = [1, 1]} : vector<9x32xf32> to vector<1x32xf32>
    %14 = vector.extract_strided_slice %5 {offsets = [8, 0], sizes = [1, 32], strides = [1, 1]} : vector<9x32xf32> to vector<1x32xf32>
    %c0_5 = arith.constant 0 : index
    %c0_6 = arith.constant 0 : index
    %c0_7 = arith.constant 0 : index
    %15 = vector.load %arg9[%c0_5, %c0_6, %c0_7] : memref<1x1x128xf32, #tpu.memory_space<vmem>>, vector<1x1x128xf32>
    %16 = vector.shape_cast %15 : vector<1x1x128xf32> to vector<1x128xf32>
    %17 = arith.truncf %3 : vector<16x32xf32> to vector<16x32xbf16>
    %c0_8 = arith.constant 0 : index
    %c0_9 = arith.constant 0 : index
    %c0_10 = arith.constant 0 : index
    %18 = vector.load %arg4[%c0_8, %c0_9, %c0_10] : memref<1x32x96xbf16, #tpu.memory_space<vmem>>, vector<1x32x96xbf16>
    %19 = vector.shape_cast %18 : vector<1x32x96xbf16> to vector<32x96xbf16>
    %cst = arith.constant dense<0.000000e+00> : vector<16x96xf32>
    %20 = tpu.matmul %17, %19, %cst {dimension_numbers = #tpu.dot_dimension_numbers<[1], [0], [0], [1], [0, 0, 1, 1], [], []>} : vector<16x32xbf16>, vector<32x96xbf16>, vector<16x96xf32> -> vector<16x96xf32>
    %21 = vector.extract_strided_slice %20 {offsets = [0, 0], sizes = [16, 32], strides = [1, 1]} : vector<16x96xf32> to vector<16x32xf32>
    %22 = vector.broadcast %6 : vector<1x32xf32> to vector<16x32xf32>
    %23 = arith.addf %21, %22 : vector<16x32xf32>
    %24 = arith.truncf %23 : vector<16x32xf32> to vector<16x32xbf16>
    %25 = vector.extract_strided_slice %20 {offsets = [0, 32], sizes = [16, 32], strides = [1, 1]} : vector<16x96xf32> to vector<16x32xf32>
    %26 = vector.broadcast %7 : vector<1x32xf32> to vector<16x32xf32>
    %27 = arith.addf %25, %26 : vector<16x32xf32>
    %28 = arith.truncf %27 : vector<16x32xf32> to vector<16x32xbf16>
    %29 = vector.extract_strided_slice %20 {offsets = [0, 64], sizes = [16, 32], strides = [1, 1]} : vector<16x96xf32> to vector<16x32xf32>
    %30 = vector.broadcast %8 : vector<1x32xf32> to vector<16x32xf32>
    %31 = arith.addf %29, %30 : vector<16x32xf32>
    %32 = arith.truncf %31 : vector<16x32xf32> to vector<16x32xbf16>
    %c0_11 = arith.constant 0 : index
    %c0_12 = arith.constant 0 : index
    %c0_13 = arith.constant 0 : index
    %33 = vector.load %arg3[%c0_11, %c0_12, %c0_13] : memref<2x1x8xf32, #tpu.memory_space<vmem>>, vector<1x1x8xf32>
    %34 = vector.shape_cast %33 : vector<1x1x8xf32> to vector<1x8xf32>
    %35 = vector.extract_strided_slice %24 {offsets = [0, 0], sizes = [8, 8], strides = [1, 1]} : vector<16x32xbf16> to vector<8x8xbf16>
    %36 = vector.extract_strided_slice %28 {offsets = [0, 0], sizes = [8, 8], strides = [1, 1]} : vector<16x32xbf16> to vector<8x8xbf16>
    %37 = vector.extract_strided_slice %32 {offsets = [0, 0], sizes = [8, 8], strides = [1, 1]} : vector<16x32xbf16> to vector<8x8xbf16>
    %38 = tpu.transpose %36, [1, 0] : vector<8x8xbf16> -> vector<8x8xbf16>
    %cst_14 = arith.constant dense<0.000000e+00> : vector<8x8xf32>
    %39 = tpu.matmul %35, %38, %cst_14 {dimension_numbers = #tpu.dot_dimension_numbers<[1], [0], [0], [1], [0, 0, 1, 1], [], []>} : vector<8x8xbf16>, vector<8x8xbf16>, vector<8x8xf32> -> vector<8x8xf32>
    %40 = vector.broadcast %34 : vector<1x8xf32> to vector<8x8xf32>
    %41 = arith.addf %39, %40 : vector<8x8xf32>
    %cst_15 = arith.constant dense<0xFF800000> : vector<8xf32>
    %42 = vector.multi_reduction <maximumf>, %41, %cst_15 [1] : vector<8x8xf32> to vector<8xf32>
    %43 = vector.shape_cast %42 : vector<8xf32> to vector<8x1xf32>
    %44 = vector.broadcast %43 : vector<8x1xf32> to vector<8x8xf32>
    %45 = arith.subf %41, %44 : vector<8x8xf32>
    %46 = math.exp %45 : vector<8x8xf32>
    %cst_16 = arith.constant dense<0.000000e+00> : vector<8xf32>
    %47 = vector.multi_reduction <add>, %46, %cst_16 [1] : vector<8x8xf32> to vector<8xf32>
    %48 = vector.shape_cast %47 : vector<8xf32> to vector<8x1xf32>
    %49 = arith.truncf %46 : vector<8x8xf32> to vector<8x8xbf16>
    %cst_17 = arith.constant dense<0.000000e+00> : vector<8x8xf32>
    %50 = tpu.matmul %49, %37, %cst_17 {dimension_numbers = #tpu.dot_dimension_numbers<[1], [0], [0], [1], [0, 0, 1, 1], [], []>} : vector<8x8xbf16>, vector<8x8xbf16>, vector<8x8xf32> -> vector<8x8xf32>
    %51 = tpu.reciprocal %48 {approx = true} : vector<8x1xf32> -> vector<8x1xf32>
    %52 = vector.broadcast %51 : vector<8x1xf32> to vector<8x8xf32>
    %53 = arith.mulf %50, %52 : vector<8x8xf32>
    %54 = vector.extract_strided_slice %24 {offsets = [0, 8], sizes = [8, 8], strides = [1, 1]} : vector<16x32xbf16> to vector<8x8xbf16>
    %55 = vector.extract_strided_slice %28 {offsets = [0, 8], sizes = [8, 8], strides = [1, 1]} : vector<16x32xbf16> to vector<8x8xbf16>
    %56 = vector.extract_strided_slice %32 {offsets = [0, 8], sizes = [8, 8], strides = [1, 1]} : vector<16x32xbf16> to vector<8x8xbf16>
    %57 = tpu.transpose %55, [1, 0] : vector<8x8xbf16> -> vector<8x8xbf16>
    %cst_18 = arith.constant dense<0.000000e+00> : vector<8x8xf32>
    %58 = tpu.matmul %54, %57, %cst_18 {dimension_numbers = #tpu.dot_dimension_numbers<[1], [0], [0], [1], [0, 0, 1, 1], [], []>} : vector<8x8xbf16>, vector<8x8xbf16>, vector<8x8xf32> -> vector<8x8xf32>
    %59 = vector.broadcast %34 : vector<1x8xf32> to vector<8x8xf32>
    %60 = arith.addf %58, %59 : vector<8x8xf32>
    %cst_19 = arith.constant dense<0xFF800000> : vector<8xf32>
    %61 = vector.multi_reduction <maximumf>, %60, %cst_19 [1] : vector<8x8xf32> to vector<8xf32>
    %62 = vector.shape_cast %61 : vector<8xf32> to vector<8x1xf32>
    %63 = vector.broadcast %62 : vector<8x1xf32> to vector<8x8xf32>
    %64 = arith.subf %60, %63 : vector<8x8xf32>
    %65 = math.exp %64 : vector<8x8xf32>
    %cst_20 = arith.constant dense<0.000000e+00> : vector<8xf32>
    %66 = vector.multi_reduction <add>, %65, %cst_20 [1] : vector<8x8xf32> to vector<8xf32>
    %67 = vector.shape_cast %66 : vector<8xf32> to vector<8x1xf32>
    %68 = arith.truncf %65 : vector<8x8xf32> to vector<8x8xbf16>
    %cst_21 = arith.constant dense<0.000000e+00> : vector<8x8xf32>
    %69 = tpu.matmul %68, %56, %cst_21 {dimension_numbers = #tpu.dot_dimension_numbers<[1], [0], [0], [1], [0, 0, 1, 1], [], []>} : vector<8x8xbf16>, vector<8x8xbf16>, vector<8x8xf32> -> vector<8x8xf32>
    %70 = tpu.reciprocal %67 {approx = true} : vector<8x1xf32> -> vector<8x1xf32>
    %71 = vector.broadcast %70 : vector<8x1xf32> to vector<8x8xf32>
    %72 = arith.mulf %69, %71 : vector<8x8xf32>
    %73 = vector.extract_strided_slice %24 {offsets = [0, 16], sizes = [8, 8], strides = [1, 1]} : vector<16x32xbf16> to vector<8x8xbf16>
    %74 = vector.extract_strided_slice %28 {offsets = [0, 16], sizes = [8, 8], strides = [1, 1]} : vector<16x32xbf16> to vector<8x8xbf16>
    %75 = vector.extract_strided_slice %32 {offsets = [0, 16], sizes = [8, 8], strides = [1, 1]} : vector<16x32xbf16> to vector<8x8xbf16>
    %76 = tpu.transpose %74, [1, 0] : vector<8x8xbf16> -> vector<8x8xbf16>
    %cst_22 = arith.constant dense<0.000000e+00> : vector<8x8xf32>
    %77 = tpu.matmul %73, %76, %cst_22 {dimension_numbers = #tpu.dot_dimension_numbers<[1], [0], [0], [1], [0, 0, 1, 1], [], []>} : vector<8x8xbf16>, vector<8x8xbf16>, vector<8x8xf32> -> vector<8x8xf32>
    %78 = vector.broadcast %34 : vector<1x8xf32> to vector<8x8xf32>
    %79 = arith.addf %77, %78 : vector<8x8xf32>
    %cst_23 = arith.constant dense<0xFF800000> : vector<8xf32>
    %80 = vector.multi_reduction <maximumf>, %79, %cst_23 [1] : vector<8x8xf32> to vector<8xf32>
    %81 = vector.shape_cast %80 : vector<8xf32> to vector<8x1xf32>
    %82 = vector.broadcast %81 : vector<8x1xf32> to vector<8x8xf32>
    %83 = arith.subf %79, %82 : vector<8x8xf32>
    %84 = math.exp %83 : vector<8x8xf32>
    %cst_24 = arith.constant dense<0.000000e+00> : vector<8xf32>
    %85 = vector.multi_reduction <add>, %84, %cst_24 [1] : vector<8x8xf32> to vector<8xf32>
    %86 = vector.shape_cast %85 : vector<8xf32> to vector<8x1xf32>
    %87 = arith.truncf %84 : vector<8x8xf32> to vector<8x8xbf16>
    %cst_25 = arith.constant dense<0.000000e+00> : vector<8x8xf32>
    %88 = tpu.matmul %87, %75, %cst_25 {dimension_numbers = #tpu.dot_dimension_numbers<[1], [0], [0], [1], [0, 0, 1, 1], [], []>} : vector<8x8xbf16>, vector<8x8xbf16>, vector<8x8xf32> -> vector<8x8xf32>
    %89 = tpu.reciprocal %86 {approx = true} : vector<8x1xf32> -> vector<8x1xf32>
    %90 = vector.broadcast %89 : vector<8x1xf32> to vector<8x8xf32>
    %91 = arith.mulf %88, %90 : vector<8x8xf32>
    %92 = vector.extract_strided_slice %24 {offsets = [0, 24], sizes = [8, 8], strides = [1, 1]} : vector<16x32xbf16> to vector<8x8xbf16>
    %93 = vector.extract_strided_slice %28 {offsets = [0, 24], sizes = [8, 8], strides = [1, 1]} : vector<16x32xbf16> to vector<8x8xbf16>
    %94 = vector.extract_strided_slice %32 {offsets = [0, 24], sizes = [8, 8], strides = [1, 1]} : vector<16x32xbf16> to vector<8x8xbf16>
    %95 = tpu.transpose %93, [1, 0] : vector<8x8xbf16> -> vector<8x8xbf16>
    %cst_26 = arith.constant dense<0.000000e+00> : vector<8x8xf32>
    %96 = tpu.matmul %92, %95, %cst_26 {dimension_numbers = #tpu.dot_dimension_numbers<[1], [0], [0], [1], [0, 0, 1, 1], [], []>} : vector<8x8xbf16>, vector<8x8xbf16>, vector<8x8xf32> -> vector<8x8xf32>
    %97 = vector.broadcast %34 : vector<1x8xf32> to vector<8x8xf32>
    %98 = arith.addf %96, %97 : vector<8x8xf32>
    %cst_27 = arith.constant dense<0xFF800000> : vector<8xf32>
    %99 = vector.multi_reduction <maximumf>, %98, %cst_27 [1] : vector<8x8xf32> to vector<8xf32>
    %100 = vector.shape_cast %99 : vector<8xf32> to vector<8x1xf32>
    %101 = vector.broadcast %100 : vector<8x1xf32> to vector<8x8xf32>
    %102 = arith.subf %98, %101 : vector<8x8xf32>
    %103 = math.exp %102 : vector<8x8xf32>
    %cst_28 = arith.constant dense<0.000000e+00> : vector<8xf32>
    %104 = vector.multi_reduction <add>, %103, %cst_28 [1] : vector<8x8xf32> to vector<8xf32>
    %105 = vector.shape_cast %104 : vector<8xf32> to vector<8x1xf32>
    %106 = arith.truncf %103 : vector<8x8xf32> to vector<8x8xbf16>
    %cst_29 = arith.constant dense<0.000000e+00> : vector<8x8xf32>
    %107 = tpu.matmul %106, %94, %cst_29 {dimension_numbers = #tpu.dot_dimension_numbers<[1], [0], [0], [1], [0, 0, 1, 1], [], []>} : vector<8x8xbf16>, vector<8x8xbf16>, vector<8x8xf32> -> vector<8x8xf32>
    %108 = tpu.reciprocal %105 {approx = true} : vector<8x1xf32> -> vector<8x1xf32>
    %109 = vector.broadcast %108 : vector<8x1xf32> to vector<8x8xf32>
    %110 = arith.mulf %107, %109 : vector<8x8xf32>
    %111 = tpu.concatenate %53, %72, %91, %110 in 1 : vector<8x8xf32>, vector<8x8xf32>, vector<8x8xf32>, vector<8x8xf32> -> vector<8x32xf32>
    %c1 = arith.constant 1 : index
    %c0_30 = arith.constant 0 : index
    %c0_31 = arith.constant 0 : index
    %112 = vector.load %arg3[%c1, %c0_30, %c0_31] : memref<2x1x8xf32, #tpu.memory_space<vmem>>, vector<1x1x8xf32>
    %113 = vector.shape_cast %112 : vector<1x1x8xf32> to vector<1x8xf32>
    %114 = vector.extract_strided_slice %24 {offsets = [8, 0], sizes = [8, 8], strides = [1, 1]} : vector<16x32xbf16> to vector<8x8xbf16>
    %115 = vector.extract_strided_slice %28 {offsets = [8, 0], sizes = [8, 8], strides = [1, 1]} : vector<16x32xbf16> to vector<8x8xbf16>
    %116 = vector.extract_strided_slice %32 {offsets = [8, 0], sizes = [8, 8], strides = [1, 1]} : vector<16x32xbf16> to vector<8x8xbf16>
    %117 = tpu.transpose %115, [1, 0] : vector<8x8xbf16> -> vector<8x8xbf16>
    %cst_32 = arith.constant dense<0.000000e+00> : vector<8x8xf32>
    %118 = tpu.matmul %114, %117, %cst_32 {dimension_numbers = #tpu.dot_dimension_numbers<[1], [0], [0], [1], [0, 0, 1, 1], [], []>} : vector<8x8xbf16>, vector<8x8xbf16>, vector<8x8xf32> -> vector<8x8xf32>
    %119 = vector.broadcast %113 : vector<1x8xf32> to vector<8x8xf32>
    %120 = arith.addf %118, %119 : vector<8x8xf32>
    %cst_33 = arith.constant dense<0xFF800000> : vector<8xf32>
    %121 = vector.multi_reduction <maximumf>, %120, %cst_33 [1] : vector<8x8xf32> to vector<8xf32>
    %122 = vector.shape_cast %121 : vector<8xf32> to vector<8x1xf32>
    %123 = vector.broadcast %122 : vector<8x1xf32> to vector<8x8xf32>
    %124 = arith.subf %120, %123 : vector<8x8xf32>
    %125 = math.exp %124 : vector<8x8xf32>
    %cst_34 = arith.constant dense<0.000000e+00> : vector<8xf32>
    %126 = vector.multi_reduction <add>, %125, %cst_34 [1] : vector<8x8xf32> to vector<8xf32>
    %127 = vector.shape_cast %126 : vector<8xf32> to vector<8x1xf32>
    %128 = arith.truncf %125 : vector<8x8xf32> to vector<8x8xbf16>
    %cst_35 = arith.constant dense<0.000000e+00> : vector<8x8xf32>
    %129 = tpu.matmul %128, %116, %cst_35 {dimension_numbers = #tpu.dot_dimension_numbers<[1], [0], [0], [1], [0, 0, 1, 1], [], []>} : vector<8x8xbf16>, vector<8x8xbf16>, vector<8x8xf32> -> vector<8x8xf32>
    %130 = tpu.reciprocal %127 {approx = true} : vector<8x1xf32> -> vector<8x1xf32>
    %131 = vector.broadcast %130 : vector<8x1xf32> to vector<8x8xf32>
    %132 = arith.mulf %129, %131 : vector<8x8xf32>
    %133 = vector.extract_strided_slice %24 {offsets = [8, 8], sizes = [8, 8], strides = [1, 1]} : vector<16x32xbf16> to vector<8x8xbf16>
    %134 = vector.extract_strided_slice %28 {offsets = [8, 8], sizes = [8, 8], strides = [1, 1]} : vector<16x32xbf16> to vector<8x8xbf16>
    %135 = vector.extract_strided_slice %32 {offsets = [8, 8], sizes = [8, 8], strides = [1, 1]} : vector<16x32xbf16> to vector<8x8xbf16>
    %136 = tpu.transpose %134, [1, 0] : vector<8x8xbf16> -> vector<8x8xbf16>
    %cst_36 = arith.constant dense<0.000000e+00> : vector<8x8xf32>
    %137 = tpu.matmul %133, %136, %cst_36 {dimension_numbers = #tpu.dot_dimension_numbers<[1], [0], [0], [1], [0, 0, 1, 1], [], []>} : vector<8x8xbf16>, vector<8x8xbf16>, vector<8x8xf32> -> vector<8x8xf32>
    %138 = vector.broadcast %113 : vector<1x8xf32> to vector<8x8xf32>
    %139 = arith.addf %137, %138 : vector<8x8xf32>
    %cst_37 = arith.constant dense<0xFF800000> : vector<8xf32>
    %140 = vector.multi_reduction <maximumf>, %139, %cst_37 [1] : vector<8x8xf32> to vector<8xf32>
    %141 = vector.shape_cast %140 : vector<8xf32> to vector<8x1xf32>
    %142 = vector.broadcast %141 : vector<8x1xf32> to vector<8x8xf32>
    %143 = arith.subf %139, %142 : vector<8x8xf32>
    %144 = math.exp %143 : vector<8x8xf32>
    %cst_38 = arith.constant dense<0.000000e+00> : vector<8xf32>
    %145 = vector.multi_reduction <add>, %144, %cst_38 [1] : vector<8x8xf32> to vector<8xf32>
    %146 = vector.shape_cast %145 : vector<8xf32> to vector<8x1xf32>
    %147 = arith.truncf %144 : vector<8x8xf32> to vector<8x8xbf16>
    %cst_39 = arith.constant dense<0.000000e+00> : vector<8x8xf32>
    %148 = tpu.matmul %147, %135, %cst_39 {dimension_numbers = #tpu.dot_dimension_numbers<[1], [0], [0], [1], [0, 0, 1, 1], [], []>} : vector<8x8xbf16>, vector<8x8xbf16>, vector<8x8xf32> -> vector<8x8xf32>
    %149 = tpu.reciprocal %146 {approx = true} : vector<8x1xf32> -> vector<8x1xf32>
    %150 = vector.broadcast %149 : vector<8x1xf32> to vector<8x8xf32>
    %151 = arith.mulf %148, %150 : vector<8x8xf32>
    %152 = vector.extract_strided_slice %24 {offsets = [8, 16], sizes = [8, 8], strides = [1, 1]} : vector<16x32xbf16> to vector<8x8xbf16>
    %153 = vector.extract_strided_slice %28 {offsets = [8, 16], sizes = [8, 8], strides = [1, 1]} : vector<16x32xbf16> to vector<8x8xbf16>
    %154 = vector.extract_strided_slice %32 {offsets = [8, 16], sizes = [8, 8], strides = [1, 1]} : vector<16x32xbf16> to vector<8x8xbf16>
    %155 = tpu.transpose %153, [1, 0] : vector<8x8xbf16> -> vector<8x8xbf16>
    %cst_40 = arith.constant dense<0.000000e+00> : vector<8x8xf32>
    %156 = tpu.matmul %152, %155, %cst_40 {dimension_numbers = #tpu.dot_dimension_numbers<[1], [0], [0], [1], [0, 0, 1, 1], [], []>} : vector<8x8xbf16>, vector<8x8xbf16>, vector<8x8xf32> -> vector<8x8xf32>
    %157 = vector.broadcast %113 : vector<1x8xf32> to vector<8x8xf32>
    %158 = arith.addf %156, %157 : vector<8x8xf32>
    %cst_41 = arith.constant dense<0xFF800000> : vector<8xf32>
    %159 = vector.multi_reduction <maximumf>, %158, %cst_41 [1] : vector<8x8xf32> to vector<8xf32>
    %160 = vector.shape_cast %159 : vector<8xf32> to vector<8x1xf32>
    %161 = vector.broadcast %160 : vector<8x1xf32> to vector<8x8xf32>
    %162 = arith.subf %158, %161 : vector<8x8xf32>
    %163 = math.exp %162 : vector<8x8xf32>
    %cst_42 = arith.constant dense<0.000000e+00> : vector<8xf32>
    %164 = vector.multi_reduction <add>, %163, %cst_42 [1] : vector<8x8xf32> to vector<8xf32>
    %165 = vector.shape_cast %164 : vector<8xf32> to vector<8x1xf32>
    %166 = arith.truncf %163 : vector<8x8xf32> to vector<8x8xbf16>
    %cst_43 = arith.constant dense<0.000000e+00> : vector<8x8xf32>
    %167 = tpu.matmul %166, %154, %cst_43 {dimension_numbers = #tpu.dot_dimension_numbers<[1], [0], [0], [1], [0, 0, 1, 1], [], []>} : vector<8x8xbf16>, vector<8x8xbf16>, vector<8x8xf32> -> vector<8x8xf32>
    %168 = tpu.reciprocal %165 {approx = true} : vector<8x1xf32> -> vector<8x1xf32>
    %169 = vector.broadcast %168 : vector<8x1xf32> to vector<8x8xf32>
    %170 = arith.mulf %167, %169 : vector<8x8xf32>
    %171 = vector.extract_strided_slice %24 {offsets = [8, 24], sizes = [8, 8], strides = [1, 1]} : vector<16x32xbf16> to vector<8x8xbf16>
    %172 = vector.extract_strided_slice %28 {offsets = [8, 24], sizes = [8, 8], strides = [1, 1]} : vector<16x32xbf16> to vector<8x8xbf16>
    %173 = vector.extract_strided_slice %32 {offsets = [8, 24], sizes = [8, 8], strides = [1, 1]} : vector<16x32xbf16> to vector<8x8xbf16>
    %174 = tpu.transpose %172, [1, 0] : vector<8x8xbf16> -> vector<8x8xbf16>
    %cst_44 = arith.constant dense<0.000000e+00> : vector<8x8xf32>
    %175 = tpu.matmul %171, %174, %cst_44 {dimension_numbers = #tpu.dot_dimension_numbers<[1], [0], [0], [1], [0, 0, 1, 1], [], []>} : vector<8x8xbf16>, vector<8x8xbf16>, vector<8x8xf32> -> vector<8x8xf32>
    %176 = vector.broadcast %113 : vector<1x8xf32> to vector<8x8xf32>
    %177 = arith.addf %175, %176 : vector<8x8xf32>
    %cst_45 = arith.constant dense<0xFF800000> : vector<8xf32>
    %178 = vector.multi_reduction <maximumf>, %177, %cst_45 [1] : vector<8x8xf32> to vector<8xf32>
    %179 = vector.shape_cast %178 : vector<8xf32> to vector<8x1xf32>
    %180 = vector.broadcast %179 : vector<8x1xf32> to vector<8x8xf32>
    %181 = arith.subf %177, %180 : vector<8x8xf32>
    %182 = math.exp %181 : vector<8x8xf32>
    %cst_46 = arith.constant dense<0.000000e+00> : vector<8xf32>
    %183 = vector.multi_reduction <add>, %182, %cst_46 [1] : vector<8x8xf32> to vector<8xf32>
    %184 = vector.shape_cast %183 : vector<8xf32> to vector<8x1xf32>
    %185 = arith.truncf %182 : vector<8x8xf32> to vector<8x8xbf16>
    %cst_47 = arith.constant dense<0.000000e+00> : vector<8x8xf32>
    %186 = tpu.matmul %185, %173, %cst_47 {dimension_numbers = #tpu.dot_dimension_numbers<[1], [0], [0], [1], [0, 0, 1, 1], [], []>} : vector<8x8xbf16>, vector<8x8xbf16>, vector<8x8xf32> -> vector<8x8xf32>
    %187 = tpu.reciprocal %184 {approx = true} : vector<8x1xf32> -> vector<8x1xf32>
    %188 = vector.broadcast %187 : vector<8x1xf32> to vector<8x8xf32>
    %189 = arith.mulf %186, %188 : vector<8x8xf32>
    %190 = tpu.concatenate %132, %151, %170, %189 in 1 : vector<8x8xf32>, vector<8x8xf32>, vector<8x8xf32>, vector<8x8xf32> -> vector<8x32xf32>
    %191 = tpu.concatenate %111, %190 in 0 : vector<8x32xf32>, vector<8x32xf32> -> vector<16x32xf32>
    %192 = arith.truncf %191 : vector<16x32xf32> to vector<16x32xbf16>
    %c0_48 = arith.constant 0 : index
    %c0_49 = arith.constant 0 : index
    %c0_50 = arith.constant 0 : index
    %193 = vector.load %arg5[%c0_48, %c0_49, %c0_50] : memref<1x32x32xbf16, #tpu.memory_space<vmem>>, vector<1x32x32xbf16>
    %194 = vector.shape_cast %193 : vector<1x32x32xbf16> to vector<32x32xbf16>
    %cst_51 = arith.constant dense<0.000000e+00> : vector<16x32xf32>
    %195 = tpu.matmul %192, %194, %cst_51 {dimension_numbers = #tpu.dot_dimension_numbers<[1], [0], [0], [1], [0, 0, 1, 1], [], []>} : vector<16x32xbf16>, vector<32x32xbf16>, vector<16x32xf32> -> vector<16x32xf32>
    %196 = vector.broadcast %9 : vector<1x32xf32> to vector<16x32xf32>
    %197 = arith.addf %195, %196 : vector<16x32xf32>
    %198 = arith.addf %3, %197 : vector<16x32xf32>
    %cst_52 = arith.constant dense<0.000000e+00> : vector<16xf32>
    %199 = vector.multi_reduction <add>, %198, %cst_52 [1] : vector<16x32xf32> to vector<16xf32>
    %200 = vector.shape_cast %199 : vector<16xf32> to vector<16x1xf32>
    %cst_53 = arith.constant 3.200000e+01 : f32
    %201 = vector.broadcast %cst_53 : f32 to vector<16x1xf32>
    %202 = arith.divf %200, %201 : vector<16x1xf32>
    %203 = vector.broadcast %202 : vector<16x1xf32> to vector<16x32xf32>
    %204 = arith.subf %198, %203 : vector<16x32xf32>
    %205 = arith.mulf %204, %204 : vector<16x32xf32>
    %cst_54 = arith.constant dense<0.000000e+00> : vector<16xf32>
    %206 = vector.multi_reduction <add>, %205, %cst_54 [1] : vector<16x32xf32> to vector<16xf32>
    %207 = vector.shape_cast %206 : vector<16xf32> to vector<16x1xf32>
    %cst_55 = arith.constant 3.200000e+01 : f32
    %208 = vector.broadcast %cst_55 : f32 to vector<16x1xf32>
    %209 = arith.divf %207, %208 : vector<16x1xf32>
    %210 = vector.broadcast %202 : vector<16x1xf32> to vector<16x32xf32>
    %211 = arith.subf %198, %210 : vector<16x32xf32>
    %cst_56 = arith.constant 9.99999974E-6 : f32
    %212 = vector.broadcast %cst_56 : f32 to vector<16x1xf32>
    %213 = arith.addf %209, %212 : vector<16x1xf32>
    %214 = math.rsqrt %213 : vector<16x1xf32>
    %215 = vector.broadcast %214 : vector<16x1xf32> to vector<16x32xf32>
    %216 = arith.mulf %211, %215 : vector<16x32xf32>
    %217 = vector.broadcast %10 : vector<1x32xf32> to vector<16x32xf32>
    %218 = arith.mulf %216, %217 : vector<16x32xf32>
    %219 = vector.broadcast %11 : vector<1x32xf32> to vector<16x32xf32>
    %220 = arith.addf %218, %219 : vector<16x32xf32>
    %221 = arith.truncf %220 : vector<16x32xf32> to vector<16x32xbf16>
    %c0_57 = arith.constant 0 : index
    %c0_58 = arith.constant 0 : index
    %c0_59 = arith.constant 0 : index
    %222 = vector.load %arg6[%c0_57, %c0_58, %c0_59] : memref<1x32x128xbf16, #tpu.memory_space<vmem>>, vector<1x32x128xbf16>
    %223 = vector.shape_cast %222 : vector<1x32x128xbf16> to vector<32x128xbf16>
    %cst_60 = arith.constant dense<0.000000e+00> : vector<16x128xf32>
    %224 = tpu.matmul %221, %223, %cst_60 {dimension_numbers = #tpu.dot_dimension_numbers<[1], [0], [0], [1], [0, 0, 1, 1], [], []>} : vector<16x32xbf16>, vector<32x128xbf16>, vector<16x128xf32> -> vector<16x128xf32>
    %225 = vector.broadcast %16 : vector<1x128xf32> to vector<16x128xf32>
    %226 = arith.addf %224, %225 : vector<16x128xf32>
    %cst_61 = arith.constant 0.000000e+00 : f32
    %227 = vector.broadcast %cst_61 : f32 to vector<16x128xf32>
    %228 = arith.maximumf %226, %227 : vector<16x128xf32>
    %229 = arith.truncf %228 : vector<16x128xf32> to vector<16x128xbf16>
    %c0_62 = arith.constant 0 : index
    %c0_63 = arith.constant 0 : index
    %c0_64 = arith.constant 0 : index
    %230 = vector.load %arg7[%c0_62, %c0_63, %c0_64] : memref<1x128x32xbf16, #tpu.memory_space<vmem>>, vector<1x128x32xbf16>
    %231 = vector.shape_cast %230 : vector<1x128x32xbf16> to vector<128x32xbf16>
    %cst_65 = arith.constant dense<0.000000e+00> : vector<16x32xf32>
    %232 = tpu.matmul %229, %231, %cst_65 {dimension_numbers = #tpu.dot_dimension_numbers<[1], [0], [0], [1], [0, 0, 1, 1], [], []>} : vector<16x128xbf16>, vector<128x32xbf16>, vector<16x32xf32> -> vector<16x32xf32>
    %233 = vector.broadcast %12 : vector<1x32xf32> to vector<16x32xf32>
    %234 = arith.addf %232, %233 : vector<16x32xf32>
    %235 = arith.addf %220, %234 : vector<16x32xf32>
    %cst_66 = arith.constant dense<0.000000e+00> : vector<16xf32>
    %236 = vector.multi_reduction <add>, %235, %cst_66 [1] : vector<16x32xf32> to vector<16xf32>
    %237 = vector.shape_cast %236 : vector<16xf32> to vector<16x1xf32>
    %cst_67 = arith.constant 3.200000e+01 : f32
    %238 = vector.broadcast %cst_67 : f32 to vector<16x1xf32>
    %239 = arith.divf %237, %238 : vector<16x1xf32>
    %240 = vector.broadcast %239 : vector<16x1xf32> to vector<16x32xf32>
    %241 = arith.subf %235, %240 : vector<16x32xf32>
    %242 = arith.mulf %241, %241 : vector<16x32xf32>
    %cst_68 = arith.constant dense<0.000000e+00> : vector<16xf32>
    %243 = vector.multi_reduction <add>, %242, %cst_68 [1] : vector<16x32xf32> to vector<16xf32>
    %244 = vector.shape_cast %243 : vector<16xf32> to vector<16x1xf32>
    %cst_69 = arith.constant 3.200000e+01 : f32
    %245 = vector.broadcast %cst_69 : f32 to vector<16x1xf32>
    %246 = arith.divf %244, %245 : vector<16x1xf32>
    %247 = vector.broadcast %239 : vector<16x1xf32> to vector<16x32xf32>
    %248 = arith.subf %235, %247 : vector<16x32xf32>
    %cst_70 = arith.constant 9.99999974E-6 : f32
    %249 = vector.broadcast %cst_70 : f32 to vector<16x1xf32>
    %250 = arith.addf %246, %249 : vector<16x1xf32>
    %251 = math.rsqrt %250 : vector<16x1xf32>
    %252 = vector.broadcast %251 : vector<16x1xf32> to vector<16x32xf32>
    %253 = arith.mulf %248, %252 : vector<16x32xf32>
    %254 = vector.broadcast %13 : vector<1x32xf32> to vector<16x32xf32>
    %255 = arith.mulf %253, %254 : vector<16x32xf32>
    %256 = vector.broadcast %14 : vector<1x32xf32> to vector<16x32xf32>
    %257 = arith.addf %255, %256 : vector<16x32xf32>
    %c0_71 = arith.constant 0 : index
    %c0_72 = arith.constant 0 : index
    %258 = vector.load %arg10[%c0_71, %c0_72] : memref<16x32xf32, #tpu.memory_space<vmem>>, vector<16x32xf32>
    tpu.vector_store %arg10[%c0_71, %c0_72], %257 {strides = array<i32>} : memref<16x32xf32, #tpu.memory_space<vmem>>, vector<16x32xf32>,
    return
  }
  func.func @transform_0(%arg0: i32, %arg1: i32) -> (i32, i32) {
    %c0_i32 = arith.constant 0 : i32
    %c0_i32_0 = arith.constant 0 : i32
    return %arg0, %c0_i32 : i32, i32
  }
  func.func @transform_1(%arg0: i32, %arg1: i32) -> (i32, i32, i32) {
    %c0_i32 = arith.constant 0 : i32
    %c0_i32_0 = arith.constant 0 : i32
    %c0_i32_1 = arith.constant 0 : i32
    return %arg0, %c0_i32, %c0_i32_0 : i32, i32, i32
  }
  func.func @transform_2(%arg0: i32, %arg1: i32) -> (i32, i32, i32) {
    %c0_i32 = arith.constant 0 : i32
    %c0_i32_0 = arith.constant 0 : i32
    %c0_i32_1 = arith.constant 0 : i32
    return %arg1, %c0_i32, %c0_i32_0 : i32, i32, i32
  }
  func.func @transform_3(%arg0: i32, %arg1: i32) -> (i32, i32, i32) {
    %c0_i32 = arith.constant 0 : i32
    %c0_i32_0 = arith.constant 0 : i32
    %c0_i32_1 = arith.constant 0 : i32
    return %arg1, %c0_i32, %c0_i32_0 : i32, i32, i32
  }
  func.func @transform_4(%arg0: i32, %arg1: i32) -> (i32, i32, i32) {
    %c0_i32 = arith.constant 0 : i32
    %c0_i32_0 = arith.constant 0 : i32
    %c0_i32_1 = arith.constant 0 : i32
    return %arg1, %c0_i32, %c0_i32_0 : i32, i32, i32
  }
  func.func @transform_5(%arg0: i32, %arg1: i32) -> (i32, i32, i32) {
    %c0_i32 = arith.constant 0 : i32
    %c0_i32_0 = arith.constant 0 : i32
    %c0_i32_1 = arith.constant 0 : i32
    return %arg1, %c0_i32, %c0_i32_0 : i32, i32, i32
  }
  func.func @transform_6(%arg0: i32, %arg1: i32) -> (i32, i32, i32) {
    %c0_i32 = arith.constant 0 : i32
    %c0_i32_0 = arith.constant 0 : i32
    %c0_i32_1 = arith.constant 0 : i32
    return %arg1, %c0_i32, %c0_i32_0 : i32, i32, i32
  }
  func.func @transform_7(%arg0: i32, %arg1: i32) -> (i32, i32, i32) {
    %c0_i32 = arith.constant 0 : i32
    %c0_i32_0 = arith.constant 0 : i32
    %c0_i32_1 = arith.constant 0 : i32
    return %arg1, %c0_i32, %c0_i32_0 : i32, i32, i32
  }
  func.func @transform_8(%arg0: i32, %arg1: i32) -> (i32, i32) {
    %c0_i32 = arith.constant 0 : i32
    %c0_i32_0 = arith.constant 0 : i32
    return %arg0, %c0_i32 : i32, i32
  }
}

</mosaic_0001>

<llo_original>
// kernel: tpu_custom_call.1
$region0: #{tpu_custom_call.1}
  #allocation0 [shape = 'u32[]', space=smem, size = 0x4, offset = 0x4, fixed_abs, tag = 'smem constant byte address 0x4 - core index']
  #allocation1 [shape = 'u32[144,128]{1,0:T(1,128)}', space=vmem, size = 0x12000, scoped, tag = 'internal scratch']
  %s0 = inlined_call_operand.vmem [shape: f32[16,32], index: 0, kind: input, shape index: {}]
  %s1 = inlined_call_operand.vmem [shape: f32[2,1,8], index: 1, kind: input, shape index: {}]
  %s2 = inlined_call_operand.vmem [shape: bf16[2,32,96], index: 2, kind: input, shape index: {}]
  %s3 = inlined_call_operand.vmem [shape: bf16[2,32,32], index: 3, kind: input, shape index: {}]
  %s4 = inlined_call_operand.vmem [shape: bf16[2,32,128], index: 4, kind: input, shape index: {}]
  %s5 = inlined_call_operand.vmem [shape: bf16[2,128,32], index: 5, kind: input, shape index: {}]
  %s6 = inlined_call_operand.vmem [shape: f32[2,9,32], index: 6, kind: input, shape index: {}]
  %s7 = inlined_call_operand.vmem [shape: f32[2,1,128], index: 7, kind: input, shape index: {}]
  %s8 = inlined_call_operand.hbm [shape: f32[16,32], index: 8, kind: output, shape index: {}]
  %s9 = sld [smem:[#allocation0]]
  $region69: #{tpu_custom_call.1} parent=0
    _
  %s11 = ssub.s32 1, %s9
  %s12 = scalar_select 0, %s11, %s9
  $region1: #{tpu_custom_call.1} parent=0
    #allocation2 [shape = 'u8[8192]{0}', space=vmem, size = 0x2000, scoped, tag = 'output window, operand 0, single buffered']
    #allocation3 [shape = 's32[2]{0}', space=sflag, size = 0x8, scoped, tag = 'scoped memory for tpu_custom_call.1']
    %13 = vsyncpa [#allocation3], 0
    loop: start=0, step=1, limit=4
    $region2: #{tpu_custom_call.1} parent=1 // loop_pre_header
      _
    $region3: #{tpu_custom_call.1} parent=1 // loop_header
      %s15 = sphi 0, %s19
      %p16 = scmp.ge.s32.totalorder %s15, 4
      %s22 = sphi 0, %s34
      %s23 = sphi 0, %s30
      %s24 = sphi 0, %s22
      %s25 = sphi 0, %s23
      %s26 = sphi 0, %s24
      %s27 = sphi 0, %s25
      %s37 = sphi 0, %s39
      %s40 = sphi 0, %s37
      %s41 = sphi 0, %s40
      %s57 = sphi 0, %s41
      %s63 = sphi 0, %s65
      %s66 = sphi 0, %s63
      %s67 = sphi 0, %s66
      %s83 = sphi 0, %s67
      %s89 = sphi 0, %s91
      %s92 = sphi 0, %s89
      %s93 = sphi 0, %s92
      %s109 = sphi 0, %s93
      %s115 = sphi 0, %s117
      %s118 = sphi 0, %s115
      %s119 = sphi 0, %s118
      %s135 = sphi 0, %s119
      %s141 = sphi 0, %s143
      %s144 = sphi 0, %s141
      %s145 = sphi 0, %s144
      %s161 = sphi 0, %s145
      %s167 = sphi 0, %s169
      %s170 = sphi 0, %s167
      %s171 = sphi 0, %s170
      %s187 = sphi 0, %s171
      %s193 = sphi 0, %s195
      %s196 = sphi 0, %s193
      %s197 = sphi 0, %s196
      %s213 = sphi 0, %s197
      %s219 = sphi 0, %s221
      %s222 = sphi 0, %s219
      %s223 = sphi 0, %s222
      %s239 = sphi 0, %s223
      %s245 = sphi 0, %s247
      %s248 = sphi 0, %s245
      %s249 = sphi 0, %s248
      %s265 = sphi 0, %s249
    $region4: #{tpu_custom_call.1} parent=1 // loop_header_branch
      %18 = sbr.rel (%p16) target = $region8
    $region5: #{tpu_custom_call.1} parent=1 // loop_body
      %s20 = ssub.s32 %s15, 1
      %s21 = ssub.s32 %s15, 2
      %s28 = sadd.s32 1, %s23
      %p29 = scmp.ge.s32.totalorder %s28, 2
      %s30 = scalar_select %p29, 0, %s28
      %s31 = sadd.s32 1, %s22
      %s32 = scalar_select %p29, %s31, %s22
      %p33 = scmp.ge.s32.totalorder %s32, 1
      %s34 = scalar_select %p33, 0, %s32
      %s35 = ssub.s32 %s22, %s34
      %p36 = scmp.eq.s32.totalorder %s35, 0
      %s38 = sadd.s32 %s37, 1
      %s39 = scalar_select %p36, %s37, %s38
      %p42 = pneg %p36
      %p43 = scmp.eq.s32.totalorder %s15, 1
      %p44 = por %p42, %p43
      %p45 = scmp.ne.s32.totalorder %s37, %s40
      %p46 = scmp.eq.s32.totalorder %s15, 0
      %p47 = por %p45, %p46
      %p48 = scmp.ne.s32.totalorder %s37, %s40
      %p49 = scmp.eq.s32.totalorder %s20, 1
      %p50 = por %p48, %p49
      %p51 = scmp.ne.s32.totalorder %s40, %s41
      %p52 = scmp.eq.s32.totalorder %s20, 0
      %p53 = por %p51, %p52
      %p54 = scmp.ne.s32.totalorder %s40, %s41
      %p55 = scmp.eq.s32.totalorder %s21, 1
      %p56 = por %p54, %p55
      %p58 = scmp.ne.s32.totalorder %s41, %s57
      %p59 = scmp.eq.s32.totalorder %s21, 0
      %p60 = por %p58, %p59
      %s61 = ssub.s32 %s22, %s34
      %p62 = scmp.eq.s32.totalorder %s61, 0
      %s64 = sadd.s32 %s63, 1
      %s65 = scalar_select %p62, %s63, %s64
      %p68 = pneg %p62
      %p69 = scmp.eq.s32.totalorder %s15, 1
      %p70 = por %p68, %p69
      %p71 = scmp.ne.s32.totalorder %s63, %s66
      %p72 = scmp.eq.s32.totalorder %s15, 0
      %p73 = por %p71, %p72
      %p74 = scmp.ne.s32.totalorder %s63, %s66
      %p75 = scmp.eq.s32.totalorder %s20, 1
      %p76 = por %p74, %p75
      %p77 = scmp.ne.s32.totalorder %s66, %s67
      %p78 = scmp.eq.s32.totalorder %s20, 0
      %p79 = por %p77, %p78
      %p80 = scmp.ne.s32.totalorder %s66, %s67
      %p81 = scmp.eq.s32.totalorder %s21, 1
      %p82 = por %p80, %p81
      %p84 = scmp.ne.s32.totalorder %s67, %s83
      %p85 = scmp.eq.s32.totalorder %s21, 0
      %p86 = por %p84, %p85
      %s87 = ssub.s32 %s23, %s30
      %p88 = scmp.eq.s32.totalorder %s87, 0
      %s90 = sadd.s32 %s89, 1
      %s91 = scalar_select %p88, %s89, %s90
      %p94 = pneg %p88
      %p95 = scmp.eq.s32.totalorder %s15, 1
      %p96 = por %p94, %p95
      %p97 = scmp.ne.s32.totalorder %s89, %s92
      %p98 = scmp.eq.s32.totalorder %s15, 0
      %p99 = por %p97, %p98
      %p100 = scmp.ne.s32.totalorder %s89, %s92
      %p101 = scmp.eq.s32.totalorder %s20, 1
      %p102 = por %p100, %p101
      %p103 = scmp.ne.s32.totalorder %s92, %s93
      %p104 = scmp.eq.s32.totalorder %s20, 0
      %p105 = por %p103, %p104
      %p106 = scmp.ne.s32.totalorder %s92, %s93
      %p107 = scmp.eq.s32.totalorder %s21, 1
      %p108 = por %p106, %p107
      %p110 = scmp.ne.s32.totalorder %s93, %s109
      %p111 = scmp.eq.s32.totalorder %s21, 0
      %p112 = por %p110, %p111
      %s113 = ssub.s32 %s23, %s30
      %p114 = scmp.eq.s32.totalorder %s113, 0
      %s116 = sadd.s32 %s115, 1
      %s117 = scalar_select %p114, %s115, %s116
      %p120 = pneg %p114
      %p121 = scmp.eq.s32.totalorder %s15, 1
      %p122 = por %p120, %p121
      %p123 = scmp.ne.s32.totalorder %s115, %s118
      %p124 = scmp.eq.s32.totalorder %s15, 0
      %p125 = por %p123, %p124
      %p126 = scmp.ne.s32.totalorder %s115, %s118
      %p127 = scmp.eq.s32.totalorder %s20, 1
      %p128 = por %p126, %p127
      %p129 = scmp.ne.s32.totalorder %s118, %s119
      %p130 = scmp.eq.s32.totalorder %s20, 0
      %p131 = por %p129, %p130
      %p132 = scmp.ne.s32.totalorder %s118, %s119
      %p133 = scmp.eq.s32.totalorder %s21, 1
      %p134 = por %p132, %p133
      %p136 = scmp.ne.s32.totalorder %s119, %s135
      %p137 = scmp.eq.s32.totalorder %s21, 0
      %p138 = por %p136, %p137
      %s139 = ssub.s32 %s23, %s30
      %p140 = scmp.eq.s32.totalorder %s139, 0
      %s142 = sadd.s32 %s141, 1
      %s143 = scalar_select %p140, %s141, %s142
      %p146 = pneg %p140
      %p147 = scmp.eq.s32.totalorder %s15, 1
      %p148 = por %p146, %p147
      %p149 = scmp.ne.s32.totalorder %s141, %s144
      %p150 = scmp.eq.s32.totalorder %s15, 0
      %p151 = por %p149, %p150
      %p152 = scmp.ne.s32.totalorder %s141, %s144
      %p153 = scmp.eq.s32.totalorder %s20, 1
      %p154 = por %p152, %p153
      %p155 = scmp.ne.s32.totalorder %s144, %s145
      %p156 = scmp.eq.s32.totalorder %s20, 0
      %p157 = por %p155, %p156
      %p158 = scmp.ne.s32.totalorder %s144, %s145
      %p159 = scmp.eq.s32.totalorder %s21, 1
      %p160 = por %p158, %p159
      %p162 = scmp.ne.s32.totalorder %s145, %s161
      %p163 = scmp.eq.s32.totalorder %s21, 0
      %p164 = por %p162, %p163
      %s165 = ssub.s32 %s23, %s30
      %p166 = scmp.eq.s32.totalorder %s165, 0
      %s168 = sadd.s32 %s167, 1
      %s169 = scalar_select %p166, %s167, %s168
      %p172 = pneg %p166
      %p173 = scmp.eq.s32.totalorder %s15, 1
      %p174 = por %p172, %p173
      %p175 = scmp.ne.s32.totalorder %s167, %s170
      %p176 = scmp.eq.s32.totalorder %s15, 0
      %p177 = por %p175, %p176
      %p178 = scmp.ne.s32.totalorder %s167, %s170
      %p179 = scmp.eq.s32.totalorder %s20, 1
      %p180 = por %p178, %p179
      %p181 = scmp.ne.s32.totalorder %s170, %s171
      %p182 = scmp.eq.s32.totalorder %s20, 0
      %p183 = por %p181, %p182
      %p184 = scmp.ne.s32.totalorder %s170, %s171
      %p185 = scmp.eq.s32.totalorder %s21, 1
      %p186 = por %p184, %p185
      %p188 = scmp.ne.s32.totalorder %s171, %s187
      %p189 = scmp.eq.s32.totalorder %s21, 0
      %p190 = por %p188, %p189
      %s191 = ssub.s32 %s23, %s30
      %p192 = scmp.eq.s32.totalorder %s191, 0
      %s194 = sadd.s32 %s193, 1
      %s195 = scalar_select %p192, %s193, %s194
      %p198 = pneg %p192
      %p199 = scmp.eq.s32.totalorder %s15, 1
      %p200 = por %p198, %p199
      %p201 = scmp.ne.s32.totalorder %s193, %s196
      %p202 = scmp.eq.s32.totalorder %s15, 0
      %p203 = por %p201, %p202
      %p204 = scmp.ne.s32.totalorder %s193, %s196
      %p205 = scmp.eq.s32.totalorder %s20, 1
      %p206 = por %p204, %p205
      %p207 = scmp.ne.s32.totalorder %s196, %s197
      %p208 = scmp.eq.s32.totalorder %s20, 0
      %p209 = por %p207, %p208
      %p210 = scmp.ne.s32.totalorder %s196, %s197
      %p211 = scmp.eq.s32.totalorder %s21, 1
      %p212 = por %p210, %p211
      %p214 = scmp.ne.s32.totalorder %s197, %s213
      %p215 = scmp.eq.s32.totalorder %s21, 0
      %p216 = por %p214, %p215
      %s217 = ssub.s32 %s23, %s30
      %p218 = scmp.eq.s32.totalorder %s217, 0
      %s220 = sadd.s32 %s219, 1
      %s221 = scalar_select %p218, %s219, %s220
      %p224 = pneg %p218
      %p225 = scmp.eq.s32.totalorder %s15, 1
      %p226 = por %p224, %p225
      %p227 = scmp.ne.s32.totalorder %s219, %s222
      %p228 = scmp.eq.s32.totalorder %s15, 0
      %p229 = por %p227, %p228
      %p230 = scmp.ne.s32.totalorder %s219, %s222
      %p231 = scmp.eq.s32.totalorder %s20, 1
      %p232 = por %p230, %p231
      %p233 = scmp.ne.s32.totalorder %s222, %s223
      %p234 = scmp.eq.s32.totalorder %s20, 0
      %p235 = por %p233, %p234
      %p236 = scmp.ne.s32.totalorder %s222, %s223
      %p237 = scmp.eq.s32.totalorder %s21, 1
      %p238 = por %p236, %p237
      %p240 = scmp.ne.s32.totalorder %s223, %s239
      %p241 = scmp.eq.s32.totalorder %s21, 0
      %p242 = por %p240, %p241
      %s243 = ssub.s32 %s22, %s34
      %p244 = scmp.eq.s32.totalorder %s243, 0
      %s246 = sadd.s32 %s245, 1
      %s247 = scalar_select %p244, %s245, %s246
      %p250 = pneg %p244
      %p251 = scmp.eq.s32.totalorder %s15, 1
      %p252 = por %p250, %p251
      %p253 = scmp.ne.s32.totalorder %s245, %s248
      %p254 = scmp.eq.s32.totalorder %s15, 0
      %p255 = por %p253, %p254
      %p256 = scmp.ne.s32.totalorder %s245, %s248
      %p257 = scmp.eq.s32.totalorder %s20, 1
      %p258 = por %p256, %p257
      %p259 = scmp.ne.s32.totalorder %s248, %s249
      %p260 = scmp.eq.s32.totalorder %s20, 0
      %p261 = por %p259, %p260
      %p262 = scmp.ne.s32.totalorder %s248, %s249
      %p263 = scmp.eq.s32.totalorder %s21, 1
      %p264 = por %p262, %p263
      %p266 = scmp.ne.s32.totalorder %s249, %s265
      %p267 = scmp.eq.s32.totalorder %s21, 0
      %p268 = por %p266, %p267
      %p269 = scmp.le.s32.totalorder 1, %s15
      %p270 = scmp.lt.s32.totalorder %s15, 3
      %p271 = pnand %p269, %p270
      %p272 = pneg %p271
      // Predicated region
      $region9: #{tpu_custom_call.1} parent=5 // pred_check
        _
      $region10: #{tpu_custom_call.1} parent=5 // pred_check_branch
        %274 = sbr.rel (%p271) target = $region12
      $region11: #{tpu_custom_call.1} parent=5 // pred_region
        %s275 = ssub.s32 %s15, 1
        // Predicated region
        $region13: #{tpu_custom_call.1} parent=11 // pred_check
          %p276 = pneg %p53
        $region14: #{tpu_custom_call.1} parent=11 // pred_check_branch
          %278 = sbr.rel (%p276) target = $region16
        $region15: #{tpu_custom_call.1} parent=11 // pred_region
          %s279 = smul.u32 2, %s24
          %p280 = scmp.lt.s32.totalorder %s279, 1
          %s281 = scalar_select %p280, %s279, 1
          %s282 = smul.addr %s281, 8
          %s283 = scalar_lea.vmem %s0, %s282
          %s284 = smul.u32 2, %s24
        $region16: #{tpu_custom_call.1} parent=11 // pred_fallthru
          _
        // Predicated region
        $region17: #{tpu_custom_call.1} parent=11 // pred_check
          %p285 = pneg %p79
        $region18: #{tpu_custom_call.1} parent=11 // pred_check_branch
          %287 = sbr.rel (%p285) target = $region20
        $region19: #{tpu_custom_call.1} parent=11 // pred_region
          %s288 = smul.u32 2, %s24
          %p289 = scmp.lt.s32.totalorder %s288, 1
          %s290 = scalar_select %p289, %s288, 1
          %s291 = scalar_lea.vmem %s1, %s290
          %s292 = smul.u32 2, %s24
        $region20: #{tpu_custom_call.1} parent=11 // pred_fallthru
          _
      $region12: #{tpu_custom_call.1} parent=5 // pred_fallthru
        _
      %p293 = scmp.lt.s32.totalorder %s15, 2
      // Predicated region
      $region21: #{tpu_custom_call.1} parent=5 // pred_check
        %p294 = pneg %p293
      $region22: #{tpu_custom_call.1} parent=5 // pred_check_branch
        %296 = sbr.rel (%p294) target = $region24
      $region23: #{tpu_custom_call.1} parent=5 // pred_region
        // Predicated region
        $region25: #{tpu_custom_call.1} parent=23 // pred_check
          %p297 = pneg %p99
        $region26: #{tpu_custom_call.1} parent=23 // pred_check_branch
          %299 = sbr.rel (%p297) target = $region28
        $region27: #{tpu_custom_call.1} parent=23 // pred_region
          %p300 = scmp.lt.s32.totalorder %s23, 1
          %s301 = scalar_select %p300, %s23, 1
          %s302 = smul.addr %s301, 4
          %s303 = smul.addr %s302, 4
          %s304 = scalar_lea.vmem %s2, %s303
        $region28: #{tpu_custom_call.1} parent=23 // pred_fallthru
          _
        // Predicated region
        $region29: #{tpu_custom_call.1} parent=23 // pred_check
          %p305 = pneg %p125
        $region30: #{tpu_custom_call.1} parent=23 // pred_check_branch
          %307 = sbr.rel (%p305) target = $region32
        $region31: #{tpu_custom_call.1} parent=23 // pred_region
          %p308 = scmp.lt.s32.totalorder %s23, 1
          %s309 = scalar_select %p308, %s23, 1
          %s310 = smul.addr %s309, 4
          %s311 = smul.addr %s310, 4
          %s312 = scalar_lea.vmem %s3, %s311
        $region32: #{tpu_custom_call.1} parent=23 // pred_fallthru
          _
        // Predicated region
        $region33: #{tpu_custom_call.1} parent=23 // pred_check
          %p313 = pneg %p151
        $region34: #{tpu_custom_call.1} parent=23 // pred_check_branch
          %315 = sbr.rel (%p313) target = $region36
        $region35: #{tpu_custom_call.1} parent=23 // pred_region
          %p316 = scmp.lt.s32.totalorder %s23, 1
          %s317 = scalar_select %p316, %s23, 1
          %s318 = smul.addr %s317, 4
          %s319 = smul.addr %s318, 4
          %s320 = scalar_lea.vmem %s4, %s319
        $region36: #{tpu_custom_call.1} parent=23 // pred_fallthru
          _
        // Predicated region
        $region37: #{tpu_custom_call.1} parent=23 // pred_check
          %p321 = pneg %p177
        $region38: #{tpu_custom_call.1} parent=23 // pred_check_branch
          %323 = sbr.rel (%p321) target = $region40
        $region39: #{tpu_custom_call.1} parent=23 // pred_region
          %p324 = scmp.lt.s32.totalorder %s23, 1
          %s325 = scalar_select %p324, %s23, 1
          %s326 = smul.addr %s325, 16
          %s327 = smul.addr %s326, 4
          %s328 = scalar_lea.vmem %s5, %s327
        $region40: #{tpu_custom_call.1} parent=23 // pred_fallthru
          _
        // Predicated region
        $region41: #{tpu_custom_call.1} parent=23 // pred_check
          %p329 = pneg %p203
        $region42: #{tpu_custom_call.1} parent=23 // pred_check_branch
          %331 = sbr.rel (%p329) target = $region44
        $region43: #{tpu_custom_call.1} parent=23 // pred_region
          %p332 = scmp.lt.s32.totalorder %s23, 1
          %s333 = scalar_select %p332, %s23, 1
          %s334 = smul.addr %s333, 2
          %s335 = smul.addr %s334, 8
          %s336 = scalar_lea.vmem %s6, %s335
        $region44: #{tpu_custom_call.1} parent=23 // pred_fallthru
          _
        // Predicated region
        $region45: #{tpu_custom_call.1} parent=23 // pred_check
          %p337 = pneg %p229
        $region46: #{tpu_custom_call.1} parent=23 // pred_check_branch
          %339 = sbr.rel (%p337) target = $region48
        $region47: #{tpu_custom_call.1} parent=23 // pred_region
          %p340 = scmp.lt.s32.totalorder %s23, 1
          %s341 = scalar_select %p340, %s23, 1
          %s342 = scalar_lea.vmem %s7, %s341
        $region48: #{tpu_custom_call.1} parent=23 // pred_fallthru
          _
      $region24: #{tpu_custom_call.1} parent=5 // pred_fallthru
        _
      %p343 = scmp.le.s32.totalorder 1, %s15
      %p344 = scmp.lt.s32.totalorder %s15, 3
      %p345 = pnand %p343, %p344
      %p346 = pneg %p345
      // Predicated region
      $region49: #{tpu_custom_call.1} parent=5 // pred_check
        _
      $region50: #{tpu_custom_call.1} parent=5 // pred_check_branch
        %348 = sbr.rel (%p345) target = $region52
      $region51: #{tpu_custom_call.1} parent=5 // pred_region
        %s349 = ssub.s32 %s15, 1
        %s350 = smul.u32 2, %s24
        %p351 = scmp.lt.s32.totalorder %s350, 1
        %s352 = scalar_select %p351, %s350, 1
        %s353 = smul.addr %s352, 8
        %s354 = scalar_lea.vmem %s0, %s353
        %p355 = pneg %p53
        %p356 = pneg %p50
        %s357 = smul.u32 2, %s24
        %p358 = scmp.lt.s32.totalorder %s357, 1
        %s359 = scalar_select %p358, %s357, 1
        %s360 = scalar_lea.vmem %s1, %s359
        %p361 = pneg %p79
        %p362 = pneg %p76
        %p363 = scmp.lt.s32.totalorder %s25, 1
        %s364 = scalar_select %p363, %s25, 1
        %s365 = smul.addr %s364, 4
        %s366 = smul.addr %s365, 4
        %s367 = scalar_lea.vmem %s2, %s366
        %p368 = pneg %p105
        %p369 = pneg %p102
        %p370 = scmp.lt.s32.totalorder %s25, 1
        %s371 = scalar_select %p370, %s25, 1
        %s372 = smul.addr %s371, 4
        %s373 = smul.addr %s372, 4
        %s374 = scalar_lea.vmem %s3, %s373
        %p375 = pneg %p131
        %p376 = pneg %p128
        %p377 = scmp.lt.s32.totalorder %s25, 1
        %s378 = scalar_select %p377, %s25, 1
        %s379 = smul.addr %s378, 4
        %s380 = smul.addr %s379, 4
        %s381 = scalar_lea.vmem %s4, %s380
        %p382 = pneg %p157
        %p383 = pneg %p154
        %p384 = scmp.lt.s32.totalorder %s25, 1
        %s385 = scalar_select %p384, %s25, 1
        %s386 = smul.addr %s385, 16
        %s387 = smul.addr %s386, 4
        %s388 = scalar_lea.vmem %s5, %s387
        %p389 = pneg %p183
        %p390 = pneg %p180
        %p391 = scmp.lt.s32.totalorder %s25, 1
        %s392 = scalar_select %p391, %s25, 1
        %s393 = smul.addr %s392, 2
        %s394 = smul.addr %s393, 8
        %s395 = scalar_lea.vmem %s6, %s394
        %p396 = pneg %p209
        %p397 = pneg %p206
        %p398 = scmp.lt.s32.totalorder %s25, 1
        %s399 = scalar_select %p398, %s25, 1
        %s400 = scalar_lea.vmem %s7, %s399
        %p401 = pneg %p235
        %p402 = pneg %p232
        %p403 = pneg %p261
        %p404 = pneg %p258
        %s405 = smul.u32 2, %s24
        %p406 = scmp.lt.s32.totalorder %s405, 1
        %s407 = scalar_select %p406, %s405, 1
        %s408 = smul.addr %s407, 8
        %s409 = scalar_lea.vmem %s0, %s408
        %s410 = smul.u32 2, %s24
        %s411 = smul.u32 2, %s24
        %p412 = scmp.lt.s32.totalorder %s411, 1
        %s413 = scalar_select %p412, %s411, 1
        %s414 = scalar_lea.vmem %s1, %s413
        %s415 = smul.u32 2, %s24
        %p416 = scmp.lt.s32.totalorder %s25, 1
        %s417 = scalar_select %p416, %s25, 1
        %s418 = smul.addr %s417, 4
        %s419 = smul.addr %s418, 4
        %s420 = scalar_lea.vmem %s2, %s419
        %p421 = scmp.lt.s32.totalorder %s25, 1
        %s422 = scalar_select %p421, %s25, 1
        %s423 = smul.addr %s422, 4
        %s424 = smul.addr %s423, 4
        %s425 = scalar_lea.vmem %s3, %s424
        %p426 = scmp.lt.s32.totalorder %s25, 1
        %s427 = scalar_select %p426, %s25, 1
        %s428 = smul.addr %s427, 4
        %s429 = smul.addr %s428, 4
        %s430 = scalar_lea.vmem %s4, %s429
        %p431 = scmp.lt.s32.totalorder %s25, 1
        %s432 = scalar_select %p431, %s25, 1
        %s433 = smul.addr %s432, 16
        %s434 = smul.addr %s433, 4
        %s435 = scalar_lea.vmem %s5, %s434
        %p436 = scmp.lt.s32.totalorder %s25, 1
        %s437 = scalar_select %p436, %s25, 1
        %s438 = smul.addr %s437, 2
        %s439 = smul.addr %s438, 8
        %s440 = scalar_lea.vmem %s6, %s439
        %p441 = scmp.lt.s32.totalorder %s25, 1
        %s442 = scalar_select %p441, %s25, 1
        %s443 = scalar_lea.vmem %s7, %s442
        %s444 = smul.u32 2, %s24
        %p446 = scmp.eq.s32.totalorder %s25, 0
        // Predicated region
        $region53: #{tpu_custom_call.1} parent=51 // pred_check
          %p447 = pneg %p446
        $region54: #{tpu_custom_call.1} parent=51 // pred_check_branch
          %449 = sbr.rel (%p447) target = $region56
        $region55: #{tpu_custom_call.1} parent=51 // pred_region
          %v450 = vld [vmem:[%s409] sm:$0xff]
          %v451 = vld [vmem:[%s409 + $0x8] sm:$0xff]
          %vm452 = vcmask 261120
          %453 = vst.msk [vmem:[#allocation2] sm:$0xff] %vm452, %v450
          %454 = vst.msk [vmem:[#allocation2 + $0x8] sm:$0xff] %vm452, %v451
        $region56: #{tpu_custom_call.1} parent=51 // pred_fallthru
          _
        %v455 = vld [vmem:[#allocation2] sm:$0xff]
        %v456 = vld [vmem:[#allocation2 + $0x8] sm:$0xff]
        %v457 = vld [vmem:[%s440] sm:$0xff]
        %v458 = vld [vmem:[%s440 + $0x8] sm:$0x1]
        %v459 = vld [vmem:[%s443] sm:$0x1]
        %v460 = vpack.c.bf16 %v456, %v455
        %v461 = vld [vmem:[%s420] sm:$0xf]
        %v462 = vld [vmem:[%s420 + $0x4] sm:$0xf]
        %v463 = vld [vmem:[%s420 + $0x8] sm:$0xf]
        %v464 = vld [vmem:[%s420 + $0xc] sm:$0xf]
        %v469 = vunpack.c.l.b16 %v461
        %v470 = vunpack.c.l.b16 %v462
        %v471 = vunpack.c.l.b16 %v463
        %v472 = vunpack.c.l.b16 %v464
        %v473 = vpack.c.b16 %v470, %v469
        %v474 = vpack.c.b16 %v472, %v471
        %vm477 = vcmask 261120
        %v479 = vsel %vm477, %v460, 0
        %481 = vmatprep.subr.bf16.mxu0 0
        %482 = vmatpush1.bf16.msra.mxu0 0
        %483 = vmatprep.subr.bf16.mxu0 0
        %484 = vmatpush1.bf16.msra.mxu0 0
        %485 = vmatprep.subr.bf16.mxu0 0
        %486 = vmatpush1.bf16.msra.mxu0 0
        %487 = vmatprep.subr.bf16.mxu0 0
        %488 = vmatpush1.bf16.msra.mxu0 0
        %489 = vmatprep.subr.bf16.mxu0 0
        %490 = vmatpush1.bf16.msra.mxu0 0
        %491 = vmatprep.subr.bf16.mxu0 0
        %492 = vmatpush1.bf16.msra.mxu0 0
        %493 = vmatprep.subr.bf16.mxu0 0
        %494 = vmatpush1.bf16.msra.mxu0 %v474
        %495 = vmatprep.subr.bf16.mxu0 0
        %496 = vmatpush1.bf16.msra.mxu0 %v473
        %497 = vmatprep.subr.bf16.mxu0 0
        %498 = vmatpush2.bf16.msra.mxu0 0
        %499 = vmatprep.subr.bf16.mxu0 0
        %500 = vmatpush2.bf16.msra.mxu0 0
        %501 = vmatprep.subr.bf16.mxu0 0
        %502 = vmatpush2.bf16.msra.mxu0 0
        %503 = vmatprep.subr.bf16.mxu0 0
        %504 = vmatpush2.bf16.msra.mxu0 0
        %505 = vmatprep.subr.bf16.mxu0 0
        %506 = vmatpush2.bf16.msra.mxu0 0
        %507 = vmatprep.subr.bf16.mxu0 0
        %508 = vmatpush2.bf16.msra.mxu0 0
        %509 = vmatprep.subr.bf16.mxu0 0
        %510 = vmatpush2.bf16.msra.mxu0 0
        %511 = vmatprep.subr.bf16.mxu0 0
        %512 = vmatpush2.bf16.msra.mxu0 0
        %513 = vmatprep.mubr.bf16.mxu0 0
        %514 = vmatmul.mubr.bf16.gmra.mxu0 %v479
        %v515 = vpop.f32.mrf.mxu0
        %v516 = vadd.f32 0.0, %v515
        %v517 = vpop.f32.mrf.mxu0
        %v518 = vpop.f32.mrf.mxu0
        %v519 = vadd.f32 0.0, %v518
        %v520 = vpop.f32.mrf.mxu0
        %521 = vdwg.mxu0
        %v522 = vlaneseq
        %v523 = vshrl.u32 %v522, 7
        %v524 = vsub.s32 0, %v523
        %v525 = vrot.slane %v457, %v524
        %v526 = vadd.f32 %v516, %v525
        %v527 = vadd.f32 %v519, %v525
        %v528 = vpack.c.bf16 %v527, %v526
        %v529 = vlaneseq
        %v530 = vshrl.u32 %v529, 7
        %v531 = vsub.s32 1, %v530
        %v532 = vrot.slane %v457, %v531
        %534 = vrot.lane.b32.xlu0 %v532, 32
        %v535 = vpop.permute.xlu0 %534
        %v537 = vadd.f32 %v516, %v535
        %v538 = vadd.f32 %v519, %v535
        %v539 = vpack.c.bf16 %v538, %v537
        %v540 = vlaneseq
        %v541 = vshrl.u32 %v540, 7
        %v542 = vsub.s32 2, %v541
        %v543 = vrot.slane %v457, %v542
        %545 = vrot.lane.b32.xlu0 %v543, 64
        %v546 = vpop.permute.xlu0 %545
        %v548 = vadd.f32 %v516, %v546
        %v549 = vadd.f32 %v519, %v546
        %v550 = vpack.c.bf16 %v549, %v548
        %v551 = vld [vmem:[%s414] sm:$0x1]
        %v553 = vlaneseq
        %v554 = vshrl.u32 %v553, 7
        %v555 = vsub.s32 0, %v554
        %v556 = vrot.slane %v551, %v555
        %559 = vrot.lane.b32.xlu0 %v539, 96
        %v560 = vpop.permute.xlu0 %559
        %vm561 = vcmask 64512
        %v563 = vsel %vm561, %v528, 0
        %v566 = vsel %vm561, %v560, 0
        %568 = vmatprep.subr.bf16.mxu0 0
        %569 = vmatpush1.bf16.xpose.msra.mxu0 0
        %570 = vmatprep.subr.bf16.mxu0 0
        %571 = vmatpush1.bf16.xpose.msra.mxu0 0
        %572 = vmatprep.subr.bf16.mxu0 0
        %573 = vmatpush1.bf16.xpose.msra.mxu0 0
        %574 = vmatprep.subr.bf16.mxu0 0
        %575 = vmatpush1.bf16.xpose.msra.mxu0 0
        %576 = vmatprep.subr.bf16.mxu0 0
        %577 = vmatpush1.bf16.xpose.msra.mxu0 0
        %578 = vmatprep.subr.bf16.mxu0 0
        %579 = vmatpush1.bf16.xpose.msra.mxu0 0
        %580 = vmatprep.subr.bf16.mxu0 0
        %581 = vmatpush1.bf16.xpose.msra.mxu0 0
        %582 = vmatprep.subr.bf16.mxu0 0
        %583 = vmatpush1.bf16.xpose.msra.mxu0 %v566
        %584 = vmatprep.subr.bf16.mxu0 0
        %585 = vmatpush2.bf16.xpose.msra.mxu0 0
        %586 = vmatprep.subr.bf16.mxu0 0
        %587 = vmatpush2.bf16.xpose.msra.mxu0 0
        %588 = vmatprep.subr.bf16.mxu0 0
        %589 = vmatpush2.bf16.xpose.msra.mxu0 0
        %590 = vmatprep.subr.bf16.mxu0 0
        %591 = vmatpush2.bf16.xpose.msra.mxu0 0
        %592 = vmatprep.subr.bf16.mxu0 0
        %593 = vmatpush2.bf16.xpose.msra.mxu0 0
        %594 = vmatprep.subr.bf16.mxu0 0
        %595 = vmatpush2.bf16.xpose.msra.mxu0 0
        %596 = vmatprep.subr.bf16.mxu0 0
        %597 = vmatpush2.bf16.xpose.msra.mxu0 0
        %598 = vmatprep.subr.bf16.mxu0 0
        %599 = vmatpush2.bf16.xpose.msra.mxu0 0
        %600 = vmatprep.mubr.bf16.mxu0 0
        %601 = vmatmul.mubr.bf16.gmra.mxu0 %v563
        %v602 = vpop.f32.mrf.mxu0
        %v603 = vadd.f32 %v556, %v602
        %v604 = vpop.f32.mrf.mxu0
        %v605 = vpop.f32.mrf.mxu0
        %v606 = vpop.f32.mrf.mxu0
        %607 = vdwg.mxu0
        %v608 = vsel %vm561, %v603, -inf
        %609 = vmax.xlane.f32.xlu0 %v608
        %v610 = vpop.xlane.xlu0 %609
        %v611 = vsub.f32 %v603, %v610
        %v612 = vmul.f32 %v611, 1.442695
        %v613 = vpow.pop %v612
        %v614 = vsel %vm561, %v613, 0.0
        %615 = vadd.xlane.f32.xlu0 %v614
        %v616 = vpop.xlane.xlu0 %615
        %v617 = vpack.c.bf16 %v613, %v613
        %619 = vrot.lane.b32.xlu0 %v550, 64
        %v620 = vpop.permute.xlu0 %619
        %v622 = vsel %vm561, %v617, 0
        %vm624 = vcmask 1043456
        %v626 = vsel %vm624, %v620, 0
        %628 = vmatprep.subr.bf16.mxu0 0
        %629 = vmatpush1.bf16.msra.mxu0 0
        %630 = vmatprep.subr.bf16.mxu0 0
        %631 = vmatpush1.bf16.msra.mxu0 0
        %632 = vmatprep.subr.bf16.mxu0 0
        %633 = vmatpush1.bf16.msra.mxu0 0
        %634 = vmatprep.subr.bf16.mxu0 0
        %635 = vmatpush1.bf16.msra.mxu0 0
        %636 = vmatprep.subr.bf16.mxu0 0
        %637 = vmatpush1.bf16.msra.mxu0 0
        %638 = vmatprep.subr.bf16.mxu0 0
        %639 = vmatpush1.bf16.msra.mxu0 0
        %640 = vmatprep.subr.bf16.mxu0 0
        %641 = vmatpush1.bf16.msra.mxu0 0
        %642 = vmatprep.subr.bf16.mxu0 0
        %643 = vmatpush1.bf16.msra.mxu0 %v626
        %644 = vmatprep.subr.bf16.mxu0 0
        %645 = vmatpush2.bf16.msra.mxu0 0
        %646 = vmatprep.subr.bf16.mxu0 0
        %647 = vmatpush2.bf16.msra.mxu0 0
        %648 = vmatprep.subr.bf16.mxu0 0
        %649 = vmatpush2.bf16.msra.mxu0 0
        %650 = vmatprep.subr.bf16.mxu0 0
        %651 = vmatpush2.bf16.msra.mxu0 0
        %652 = vmatprep.subr.bf16.mxu0 0
        %653 = vmatpush2.bf16.msra.mxu0 0
        %654 = vmatprep.subr.bf16.mxu0 0
        %655 = vmatpush2.bf16.msra.mxu0 0
        %656 = vmatprep.subr.bf16.mxu0 0
        %657 = vmatpush2.bf16.msra.mxu0 0
        %658 = vmatprep.subr.bf16.mxu0 0
        %659 = vmatpush2.bf16.msra.mxu0 0
        %660 = vmatprep.mubr.bf16.mxu0 0
        %661 = vmatmul.mubr.bf16.gmra.mxu0 %v622
        %v662 = vpop.f32.mrf.mxu0
        %v663 = vadd.f32 0.0, %v662
        %v664 = vpop.f32.mrf.mxu0
        %v665 = vpop.f32.mrf.mxu0
        %v666 = vpop.f32.mrf.mxu0
        %667 = vdwg.mxu0
        %v668 = vrcp.pop %v616
        %v669 = vmul.f32 %v663, %v668
        %671 = vrot.lane.b32.xlu0 %v528, 120
        %v672 = vpop.permute.xlu0 %671
        %673 = vrot.lane.b32.xlu0 %v539, 88
        %v674 = vpop.permute.xlu0 %673
        %v676 = vsel %vm561, %v672, 0
        %v679 = vsel %vm561, %v674, 0
        %681 = vmatprep.subr.bf16.mxu0 0
        %682 = vmatpush1.bf16.xpose.msra.mxu0 0
        %683 = vmatprep.subr.bf16.mxu0 0
        %684 = vmatpush1.bf16.xpose.msra.mxu0 0
        %685 = vmatprep.subr.bf16.mxu0 0
        %686 = vmatpush1.bf16.xpose.msra.mxu0 0
        %687 = vmatprep.subr.bf16.mxu0 0
        %688 = vmatpush1.bf16.xpose.msra.mxu0 0
        %689 = vmatprep.subr.bf16.mxu0 0
        %690 = vmatpush1.bf16.xpose.msra.mxu0 0
        %691 = vmatprep.subr.bf16.mxu0 0
        %692 = vmatpush1.bf16.xpose.msra.mxu0 0
        %693 = vmatprep.subr.bf16.mxu0 0
        %694 = vmatpush1.bf16.xpose.msra.mxu0 0
        %695 = vmatprep.subr.bf16.mxu0 0
        %696 = vmatpush1.bf16.xpose.msra.mxu0 %v679
        %697 = vmatprep.subr.bf16.mxu0 0
        %698 = vmatpush2.bf16.xpose.msra.mxu0 0
        %699 = vmatprep.subr.bf16.mxu0 0
        %700 = vmatpush2.bf16.xpose.msra.mxu0 0
        %701 = vmatprep.subr.bf16.mxu0 0
        %702 = vmatpush2.bf16.xpose.msra.mxu0 0
        %703 = vmatprep.subr.bf16.mxu0 0
        %704 = vmatpush2.bf16.xpose.msra.mxu0 0
        %705 = vmatprep.subr.bf16.mxu0 0
        %706 = vmatpush2.bf16.xpose.msra.mxu0 0
        %707 = vmatprep.subr.bf16.mxu0 0
        %708 = vmatpush2.bf16.xpose.msra.mxu0 0
        %709 = vmatprep.subr.bf16.mxu0 0
        %710 = vmatpush2.bf16.xpose.msra.mxu0 0
        %711 = vmatprep.subr.bf16.mxu0 0
        %712 = vmatpush2.bf16.xpose.msra.mxu0 0
        %713 = vmatprep.mubr.bf16.mxu0 0
        %714 = vmatmul.mubr.bf16.gmra.mxu0 %v676
        %v715 = vpop.f32.mrf.mxu0
        %v716 = vadd.f32 %v556, %v715
        %v717 = vpop.f32.mrf.mxu0
        %v718 = vpop.f32.mrf.mxu0
        %v719 = vpop.f32.mrf.mxu0
        %720 = vdwg.mxu0
        %v721 = vsel %vm561, %v716, -inf
        %722 = vmax.xlane.f32.xlu0 %v721
        %v723 = vpop.xlane.xlu0 %722
        %v724 = vsub.f32 %v716, %v723
        %v725 = vmul.f32 %v724, 1.442695
        %v726 = vpow.pop %v725
        %v727 = vsel %vm561, %v726, 0.0
        %728 = vadd.xlane.f32.xlu0 %v727
        %v729 = vpop.xlane.xlu0 %728
        %v730 = vpack.c.bf16 %v726, %v726
        %731 = vrot.lane.b32.xlu0 %v550, 56
        %v732 = vpop.permute.xlu0 %731
        %v734 = vsel %vm561, %v730, 0
        %v737 = vsel %vm624, %v732, 0
        %739 = vmatprep.subr.bf16.mxu0 0
        %740 = vmatpush1.bf16.msra.mxu0 0
        %741 = vmatprep.subr.bf16.mxu0 0
        %742 = vmatpush1.bf16.msra.mxu0 0
        %743 = vmatprep.subr.bf16.mxu0 0
        %744 = vmatpush1.bf16.msra.mxu0 0
        %745 = vmatprep.subr.bf16.mxu0 0
        %746 = vmatpush1.bf16.msra.mxu0 0
        %747 = vmatprep.subr.bf16.mxu0 0
        %748 = vmatpush1.bf16.msra.mxu0 0
        %749 = vmatprep.subr.bf16.mxu0 0
        %750 = vmatpush1.bf16.msra.mxu0 0
        %751 = vmatprep.subr.bf16.mxu0 0
        %752 = vmatpush1.bf16.msra.mxu0 0
        %753 = vmatprep.subr.bf16.mxu0 0
        %754 = vmatpush1.bf16.msra.mxu0 %v737
        %755 = vmatprep.subr.bf16.mxu0 0
        %756 = vmatpush2.bf16.msra.mxu0 0
        %757 = vmatprep.subr.bf16.mxu0 0
        %758 = vmatpush2.bf16.msra.mxu0 0
        %759 = vmatprep.subr.bf16.mxu0 0
        %760 = vmatpush2.bf16.msra.mxu0 0
        %761 = vmatprep.subr.bf16.mxu0 0
        %762 = vmatpush2.bf16.msra.mxu0 0
        %763 = vmatprep.subr.bf16.mxu0 0
        %764 = vmatpush2.bf16.msra.mxu0 0
        %765 = vmatprep.subr.bf16.mxu0 0
        %766 = vmatpush2.bf16.msra.mxu0 0
        %767 = vmatprep.subr.bf16.mxu0 0
        %768 = vmatpush2.bf16.msra.mxu0 0
        %769 = vmatprep.subr.bf16.mxu0 0
        %770 = vmatpush2.bf16.msra.mxu0 0
        %771 = vmatprep.mubr.bf16.mxu0 0
        %772 = vmatmul.mubr.bf16.gmra.mxu0 %v734
        %v773 = vpop.f32.mrf.mxu0
        %v774 = vadd.f32 0.0, %v773
        %v775 = vpop.f32.mrf.mxu0
        %v776 = vpop.f32.mrf.mxu0
        %v777 = vpop.f32.mrf.mxu0
        %778 = vdwg.mxu0
        %v779 = vrcp.pop %v729
        %v780 = vmul.f32 %v774, %v779
        %781 = vrot.lane.b32.xlu0 %v528, 112
        %v782 = vpop.permute.xlu0 %781
        %783 = vrot.lane.b32.xlu0 %v539, 80
        %v784 = vpop.permute.xlu0 %783
        %v786 = vsel %vm561, %v782, 0
        %v789 = vsel %vm561, %v784, 0
        %791 = vmatprep.subr.bf16.mxu0 0
        %792 = vmatpush1.bf16.xpose.msra.mxu0 0
        %793 = vmatprep.subr.bf16.mxu0 0
        %794 = vmatpush1.bf16.xpose.msra.mxu0 0
        %795 = vmatprep.subr.bf16.mxu0 0
        %796 = vmatpush1.bf16.xpose.msra.mxu0 0
        %797 = vmatprep.subr.bf16.mxu0 0
        %798 = vmatpush1.bf16.xpose.msra.mxu0 0
        %799 = vmatprep.subr.bf16.mxu0 0
        %800 = vmatpush1.bf16.xpose.msra.mxu0 0
        %801 = vmatprep.subr.bf16.mxu0 0
        %802 = vmatpush1.bf16.xpose.msra.mxu0 0
        %803 = vmatprep.subr.bf16.mxu0 0
        %804 = vmatpush1.bf16.xpose.msra.mxu0 0
        %805 = vmatprep.subr.bf16.mxu0 0
        %806 = vmatpush1.bf16.xpose.msra.mxu0 %v789
        %807 = vmatprep.subr.bf16.mxu0 0
        %808 = vmatpush2.bf16.xpose.msra.mxu0 0
        %809 = vmatprep.subr.bf16.mxu0 0
        %810 = vmatpush2.bf16.xpose.msra.mxu0 0
        %811 = vmatprep.subr.bf16.mxu0 0
        %812 = vmatpush2.bf16.xpose.msra.mxu0 0
        %813 = vmatprep.subr.bf16.mxu0 0
        %814 = vmatpush2.bf16.xpose.msra.mxu0 0
        %815 = vmatprep.subr.bf16.mxu0 0
        %816 = vmatpush2.bf16.xpose.msra.mxu0 0
        %817 = vmatprep.subr.bf16.mxu0 0
        %818 = vmatpush2.bf16.xpose.msra.mxu0 0
        %819 = vmatprep.subr.bf16.mxu0 0
        %820 = vmatpush2.bf16.xpose.msra.mxu0 0
        %821 = vmatprep.subr.bf16.mxu0 0
        %822 = vmatpush2.bf16.xpose.msra.mxu0 0
        %823 = vmatprep.mubr.bf16.mxu0 0
        %824 = vmatmul.mubr.bf16.gmra.mxu0 %v786
        %v825 = vpop.f32.mrf.mxu0
        %v826 = vadd.f32 %v556, %v825
        %v827 = vpop.f32.mrf.mxu0
        %v828 = vpop.f32.mrf.mxu0
        %v829 = vpop.f32.mrf.mxu0
        %830 = vdwg.mxu0
        %v831 = vsel %vm561, %v826, -inf
        %832 = vmax.xlane.f32.xlu0 %v831
        %v833 = vpop.xlane.xlu0 %832
        %v834 = vsub.f32 %v826, %v833
        %v835 = vmul.f32 %v834, 1.442695
        %v836 = vpow.pop %v835
        %v837 = vsel %vm561, %v836, 0.0
        %838 = vadd.xlane.f32.xlu0 %v837
        %v839 = vpop.xlane.xlu0 %838
        %v840 = vpack.c.bf16 %v836, %v836
        %841 = vrot.lane.b32.xlu0 %v550, 48
        %v842 = vpop.permute.xlu0 %841
        %v844 = vsel %vm561, %v840, 0
        %v847 = vsel %vm624, %v842, 0
        %849 = vmatprep.subr.bf16.mxu0 0
        %850 = vmatpush1.bf16.msra.mxu0 0
        %851 = vmatprep.subr.bf16.mxu0 0
        %852 = vmatpush1.bf16.msra.mxu0 0
        %853 = vmatprep.subr.bf16.mxu0 0
        %854 = vmatpush1.bf16.msra.mxu0 0
        %855 = vmatprep.subr.bf16.mxu0 0
        %856 = vmatpush1.bf16.msra.mxu0 0
        %857 = vmatprep.subr.bf16.mxu0 0
        %858 = vmatpush1.bf16.msra.mxu0 0
        %859 = vmatprep.subr.bf16.mxu0 0
        %860 = vmatpush1.bf16.msra.mxu0 0
        %861 = vmatprep.subr.bf16.mxu0 0
        %862 = vmatpush1.bf16.msra.mxu0 0
        %863 = vmatprep.subr.bf16.mxu0 0
        %864 = vmatpush1.bf16.msra.mxu0 %v847
        %865 = vmatprep.subr.bf16.mxu0 0
        %866 = vmatpush2.bf16.msra.mxu0 0
        %867 = vmatprep.subr.bf16.mxu0 0
        %868 = vmatpush2.bf16.msra.mxu0 0
        %869 = vmatprep.subr.bf16.mxu0 0
        %870 = vmatpush2.bf16.msra.mxu0 0
        %871 = vmatprep.subr.bf16.mxu0 0
        %872 = vmatpush2.bf16.msra.mxu0 0
        %873 = vmatprep.subr.bf16.mxu0 0
        %874 = vmatpush2.bf16.msra.mxu0 0
        %875 = vmatprep.subr.bf16.mxu0 0
        %876 = vmatpush2.bf16.msra.mxu0 0
        %877 = vmatprep.subr.bf16.mxu0 0
        %878 = vmatpush2.bf16.msra.mxu0 0
        %879 = vmatprep.subr.bf16.mxu0 0
        %880 = vmatpush2.bf16.msra.mxu0 0
        %881 = vmatprep.mubr.bf16.mxu0 0
        %882 = vmatmul.mubr.bf16.gmra.mxu0 %v844
        %v883 = vpop.f32.mrf.mxu0
        %v884 = vadd.f32 0.0, %v883
        %v885 = vpop.f32.mrf.mxu0
        %v886 = vpop.f32.mrf.mxu0
        %v887 = vpop.f32.mrf.mxu0
        %888 = vdwg.mxu0
        %v889 = vrcp.pop %v839
        %v890 = vmul.f32 %v884, %v889
        %891 = vrot.lane.b32.xlu0 %v528, 104
        %v892 = vpop.permute.xlu0 %891
        %893 = vrot.lane.b32.xlu0 %v539, 72
        %v894 = vpop.permute.xlu0 %893
        %v896 = vsel %vm561, %v892, 0
        %v899 = vsel %vm561, %v894, 0
        %901 = vmatprep.subr.bf16.mxu0 0
        %902 = vmatpush1.bf16.xpose.msra.mxu0 0
        %903 = vmatprep.subr.bf16.mxu0 0
        %904 = vmatpush1.bf16.xpose.msra.mxu0 0
        %905 = vmatprep.subr.bf16.mxu0 0
        %906 = vmatpush1.bf16.xpose.msra.mxu0 0
        %907 = vmatprep.subr.bf16.mxu0 0
        %908 = vmatpush1.bf16.xpose.msra.mxu0 0
        %909 = vmatprep.subr.bf16.mxu0 0
        %910 = vmatpush1.bf16.xpose.msra.mxu0 0
        %911 = vmatprep.subr.bf16.mxu0 0
        %912 = vmatpush1.bf16.xpose.msra.mxu0 0
        %913 = vmatprep.subr.bf16.mxu0 0
        %914 = vmatpush1.bf16.xpose.msra.mxu0 0
        %915 = vmatprep.subr.bf16.mxu0 0
        %916 = vmatpush1.bf16.xpose.msra.mxu0 %v899
        %917 = vmatprep.subr.bf16.mxu0 0
        %918 = vmatpush2.bf16.xpose.msra.mxu0 0
        %919 = vmatprep.subr.bf16.mxu0 0
        %920 = vmatpush2.bf16.xpose.msra.mxu0 0
        %921 = vmatprep.subr.bf16.mxu0 0
        %922 = vmatpush2.bf16.xpose.msra.mxu0 0
        %923 = vmatprep.subr.bf16.mxu0 0
        %924 = vmatpush2.bf16.xpose.msra.mxu0 0
        %925 = vmatprep.subr.bf16.mxu0 0
        %926 = vmatpush2.bf16.xpose.msra.mxu0 0
        %927 = vmatprep.subr.bf16.mxu0 0
        %928 = vmatpush2.bf16.xpose.msra.mxu0 0
        %929 = vmatprep.subr.bf16.mxu0 0
        %930 = vmatpush2.bf16.xpose.msra.mxu0 0
        %931 = vmatprep.subr.bf16.mxu0 0
        %932 = vmatpush2.bf16.xpose.msra.mxu0 0
        %933 = vmatprep.mubr.bf16.mxu0 0
        %934 = vmatmul.mubr.bf16.gmra.mxu0 %v896
        %v935 = vpop.f32.mrf.mxu0
        %v936 = vadd.f32 %v556, %v935
        %v937 = vpop.f32.mrf.mxu0
        %v938 = vpop.f32.mrf.mxu0
        %v939 = vpop.f32.mrf.mxu0
        %940 = vdwg.mxu0
        %v941 = vsel %vm561, %v936, -inf
        %942 = vmax.xlane.f32.xlu0 %v941
        %v943 = vpop.xlane.xlu0 %942
        %v944 = vsub.f32 %v936, %v943
        %v945 = vmul.f32 %v944, 1.442695
        %v946 = vpow.pop %v945
        %v947 = vsel %vm561, %v946, 0.0
        %948 = vadd.xlane.f32.xlu0 %v947
        %v949 = vpop.xlane.xlu0 %948
        %v950 = vpack.c.bf16 %v946, %v946
        %951 = vrot.lane.b32.xlu0 %v550, 40
        %v952 = vpop.permute.xlu0 %951
        %v954 = vsel %vm561, %v950, 0
        %v957 = vsel %vm624, %v952, 0
        %959 = vmatprep.subr.bf16.mxu0 0
        %960 = vmatpush1.bf16.msra.mxu0 0
        %961 = vmatprep.subr.bf16.mxu0 0
        %962 = vmatpush1.bf16.msra.mxu0 0
        %963 = vmatprep.subr.bf16.mxu0 0
        %964 = vmatpush1.bf16.msra.mxu0 0
        %965 = vmatprep.subr.bf16.mxu0 0
        %966 = vmatpush1.bf16.msra.mxu0 0
        %967 = vmatprep.subr.bf16.mxu0 0
        %968 = vmatpush1.bf16.msra.mxu0 0
        %969 = vmatprep.subr.bf16.mxu0 0
        %970 = vmatpush1.bf16.msra.mxu0 0
        %971 = vmatprep.subr.bf16.mxu0 0
        %972 = vmatpush1.bf16.msra.mxu0 0
        %973 = vmatprep.subr.bf16.mxu0 0
        %974 = vmatpush1.bf16.msra.mxu0 %v957
        %975 = vmatprep.subr.bf16.mxu0 0
        %976 = vmatpush2.bf16.msra.mxu0 0
        %977 = vmatprep.subr.bf16.mxu0 0
        %978 = vmatpush2.bf16.msra.mxu0 0
        %979 = vmatprep.subr.bf16.mxu0 0
        %980 = vmatpush2.bf16.msra.mxu0 0
        %981 = vmatprep.subr.bf16.mxu0 0
        %982 = vmatpush2.bf16.msra.mxu0 0
        %983 = vmatprep.subr.bf16.mxu0 0
        %984 = vmatpush2.bf16.msra.mxu0 0
        %985 = vmatprep.subr.bf16.mxu0 0
        %986 = vmatpush2.bf16.msra.mxu0 0
        %987 = vmatprep.subr.bf16.mxu0 0
        %988 = vmatpush2.bf16.msra.mxu0 0
        %989 = vmatprep.subr.bf16.mxu0 0
        %990 = vmatpush2.bf16.msra.mxu0 0
        %991 = vmatprep.mubr.bf16.mxu0 0
        %992 = vmatmul.mubr.bf16.gmra.mxu0 %v954
        %v993 = vpop.f32.mrf.mxu0
        %v994 = vadd.f32 0.0, %v993
        %v995 = vpop.f32.mrf.mxu0
        %v996 = vpop.f32.mrf.mxu0
        %v997 = vpop.f32.mrf.mxu0
        %998 = vdwg.mxu0
        %v999 = vrcp.pop %v949
        %v1000 = vmul.f32 %v994, %v999
        %1002 = vrot.lane.b32.xlu0 %v780, 8
        %v1003 = vpop.permute.xlu0 %1002
        %1006 = vrot.lane.b32.xlu0 %v890, 16
        %v1007 = vpop.permute.xlu0 %1006
        %1010 = vrot.lane.b32.xlu0 %v1000, 24
        %v1011 = vpop.permute.xlu0 %1010
        %v1013 = vsel %vm561, %v669, %v1003
        %vm1014 = vcmask 130048
        %v1015 = vsel %vm1014, %v1013, %v1007
        %vm1016 = vcmask 195584
        %v1017 = vsel %vm1016, %v1015, %v1011
        %s1018 = scalar_lea.vmem %s414, 1
        %v1019 = vld [vmem:[%s1018] sm:$0x1]
        %v1021 = vlaneseq
        %v1022 = vshrl.u32 %v1021, 7
        %v1023 = vsub.s32 0, %v1022
        %v1024 = vrot.slane %v1019, %v1023
        %v1026 = vrot.slane %v528, 4
        %v1027 = vrot.slane %v539, 4
        %1028 = vrot.lane.b32.xlu0 %v1027, 96
        %v1029 = vpop.permute.xlu0 %1028
        %v1031 = vsel %vm561, %v1026, 0
        %v1034 = vsel %vm561, %v1029, 0
        %1036 = vmatprep.subr.bf16.mxu0 0
        %1037 = vmatpush1.bf16.xpose.msra.mxu0 0
        %1038 = vmatprep.subr.bf16.mxu0 0
        %1039 = vmatpush1.bf16.xpose.msra.mxu0 0
        %1040 = vmatprep.subr.bf16.mxu0 0
        %1041 = vmatpush1.bf16.xpose.msra.mxu0 0
        %1042 = vmatprep.subr.bf16.mxu0 0
        %1043 = vmatpush1.bf16.xpose.msra.mxu0 0
        %1044 = vmatprep.subr.bf16.mxu0 0
        %1045 = vmatpush1.bf16.xpose.msra.mxu0 0
        %1046 = vmatprep.subr.bf16.mxu0 0
        %1047 = vmatpush1.bf16.xpose.msra.mxu0 0
        %1048 = vmatprep.subr.bf16.mxu0 0
        %1049 = vmatpush1.bf16.xpose.msra.mxu0 0
        %1050 = vmatprep.subr.bf16.mxu0 0
        %1051 = vmatpush1.bf16.xpose.msra.mxu0 %v1034
        %1052 = vmatprep.subr.bf16.mxu0 0
        %1053 = vmatpush2.bf16.xpose.msra.mxu0 0
        %1054 = vmatprep.subr.bf16.mxu0 0
        %1055 = vmatpush2.bf16.xpose.msra.mxu0 0
        %1056 = vmatprep.subr.bf16.mxu0 0
        %1057 = vmatpush2.bf16.xpose.msra.mxu0 0
        %1058 = vmatprep.subr.bf16.mxu0 0
        %1059 = vmatpush2.bf16.xpose.msra.mxu0 0
        %1060 = vmatprep.subr.bf16.mxu0 0
        %1061 = vmatpush2.bf16.xpose.msra.mxu0 0
        %1062 = vmatprep.subr.bf16.mxu0 0
        %1063 = vmatpush2.bf16.xpose.msra.mxu0 0
        %1064 = vmatprep.subr.bf16.mxu0 0
        %1065 = vmatpush2.bf16.xpose.msra.mxu0 0
        %1066 = vmatprep.subr.bf16.mxu0 0
        %1067 = vmatpush2.bf16.xpose.msra.mxu0 0
        %1068 = vmatprep.mubr.bf16.mxu0 0
        %1069 = vmatmul.mubr.bf16.gmra.mxu0 %v1031
        %v1070 = vpop.f32.mrf.mxu0
        %v1071 = vadd.f32 %v1024, %v1070
        %v1072 = vpop.f32.mrf.mxu0
        %v1073 = vpop.f32.mrf.mxu0
        %v1074 = vpop.f32.mrf.mxu0
        %1075 = vdwg.mxu0
        %v1076 = vsel %vm561, %v1071, -inf
        %1077 = vmax.xlane.f32.xlu0 %v1076
        %v1078 = vpop.xlane.xlu0 %1077
        %v1079 = vsub.f32 %v1071, %v1078
        %v1080 = vmul.f32 %v1079, 1.442695
        %v1081 = vpow.pop %v1080
        %v1082 = vsel %vm561, %v1081, 0.0
        %1083 = vadd.xlane.f32.xlu0 %v1082
        %v1084 = vpop.xlane.xlu0 %1083
        %v1085 = vpack.c.bf16 %v1081, %v1081
        %v1086 = vrot.slane %v550, 4
        %1087 = vrot.lane.b32.xlu0 %v1086, 64
        %v1088 = vpop.permute.xlu0 %1087
        %v1090 = vsel %vm561, %v1085, 0
        %v1093 = vsel %vm624, %v1088, 0
        %1095 = vmatprep.subr.bf16.mxu0 0
        %1096 = vmatpush1.bf16.msra.mxu0 0
        %1097 = vmatprep.subr.bf16.mxu0 0
        %1098 = vmatpush1.bf16.msra.mxu0 0
        %1099 = vmatprep.subr.bf16.mxu0 0
        %1100 = vmatpush1.bf16.msra.mxu0 0
        %1101 = vmatprep.subr.bf16.mxu0 0
        %1102 = vmatpush1.bf16.msra.mxu0 0
        %1103 = vmatprep.subr.bf16.mxu0 0
        %1104 = vmatpush1.bf16.msra.mxu0 0
        %1105 = vmatprep.subr.bf16.mxu0 0
        %1106 = vmatpush1.bf16.msra.mxu0 0
        %1107 = vmatprep.subr.bf16.mxu0 0
        %1108 = vmatpush1.bf16.msra.mxu0 0
        %1109 = vmatprep.subr.bf16.mxu0 0
        %1110 = vmatpush1.bf16.msra.mxu0 %v1093
        %1111 = vmatprep.subr.bf16.mxu0 0
        %1112 = vmatpush2.bf16.msra.mxu0 0
        %1113 = vmatprep.subr.bf16.mxu0 0
        %1114 = vmatpush2.bf16.msra.mxu0 0
        %1115 = vmatprep.subr.bf16.mxu0 0
        %1116 = vmatpush2.bf16.msra.mxu0 0
        %1117 = vmatprep.subr.bf16.mxu0 0
        %1118 = vmatpush2.bf16.msra.mxu0 0
        %1119 = vmatprep.subr.bf16.mxu0 0
        %1120 = vmatpush2.bf16.msra.mxu0 0
        %1121 = vmatprep.subr.bf16.mxu0 0
        %1122 = vmatpush2.bf16.msra.mxu0 0
        %1123 = vmatprep.subr.bf16.mxu0 0
        %1124 = vmatpush2.bf16.msra.mxu0 0
        %1125 = vmatprep.subr.bf16.mxu0 0
        %1126 = vmatpush2.bf16.msra.mxu0 0
        %1127 = vmatprep.mubr.bf16.mxu0 0
        %1128 = vmatmul.mubr.bf16.gmra.mxu0 %v1090
        %v1129 = vpop.f32.mrf.mxu0
        %v1130 = vadd.f32 0.0, %v1129
        %v1131 = vpop.f32.mrf.mxu0
        %v1132 = vpop.f32.mrf.mxu0
        %v1133 = vpop.f32.mrf.mxu0
        %1134 = vdwg.mxu0
        %v1135 = vrcp.pop %v1084
        %v1136 = vmul.f32 %v1130, %v1135
        %1137 = vrot.lane.b32.xlu0 %v1026, 120
        %v1138 = vpop.permute.xlu0 %1137
        %1139 = vrot.lane.b32.xlu0 %v1027, 88
        %v1140 = vpop.permute.xlu0 %1139
        %v1142 = vsel %vm561, %v1138, 0
        %v1145 = vsel %vm561, %v1140, 0
        %1147 = vmatprep.subr.bf16.mxu0 0
        %1148 = vmatpush1.bf16.xpose.msra.mxu0 0
        %1149 = vmatprep.subr.bf16.mxu0 0
        %1150 = vmatpush1.bf16.xpose.msra.mxu0 0
        %1151 = vmatprep.subr.bf16.mxu0 0
        %1152 = vmatpush1.bf16.xpose.msra.mxu0 0
        %1153 = vmatprep.subr.bf16.mxu0 0
        %1154 = vmatpush1.bf16.xpose.msra.mxu0 0
        %1155 = vmatprep.subr.bf16.mxu0 0
        %1156 = vmatpush1.bf16.xpose.msra.mxu0 0
        %1157 = vmatprep.subr.bf16.mxu0 0
        %1158 = vmatpush1.bf16.xpose.msra.mxu0 0
        %1159 = vmatprep.subr.bf16.mxu0 0
        %1160 = vmatpush1.bf16.xpose.msra.mxu0 0
        %1161 = vmatprep.subr.bf16.mxu0 0
        %1162 = vmatpush1.bf16.xpose.msra.mxu0 %v1145
        %1163 = vmatprep.subr.bf16.mxu0 0
        %1164 = vmatpush2.bf16.xpose.msra.mxu0 0
        %1165 = vmatprep.subr.bf16.mxu0 0
        %1166 = vmatpush2.bf16.xpose.msra.mxu0 0
        %1167 = vmatprep.subr.bf16.mxu0 0
        %1168 = vmatpush2.bf16.xpose.msra.mxu0 0
        %1169 = vmatprep.subr.bf16.mxu0 0
        %1170 = vmatpush2.bf16.xpose.msra.mxu0 0
        %1171 = vmatprep.subr.bf16.mxu0 0
        %1172 = vmatpush2.bf16.xpose.msra.mxu0 0
        %1173 = vmatprep.subr.bf16.mxu0 0
        %1174 = vmatpush2.bf16.xpose.msra.mxu0 0
        %1175 = vmatprep.subr.bf16.mxu0 0
        %1176 = vmatpush2.bf16.xpose.msra.mxu0 0
        %1177 = vmatprep.subr.bf16.mxu0 0
        %1178 = vmatpush2.bf16.xpose.msra.mxu0 0
        %1179 = vmatprep.mubr.bf16.mxu0 0
        %1180 = vmatmul.mubr.bf16.gmra.mxu0 %v1142
        %v1181 = vpop.f32.mrf.mxu0
        %v1182 = vadd.f32 %v1024, %v1181
        %v1183 = vpop.f32.mrf.mxu0
        %v1184 = vpop.f32.mrf.mxu0
        %v1185 = vpop.f32.mrf.mxu0
        %1186 = vdwg.mxu0
        %v1187 = vsel %vm561, %v1182, -inf
        %1188 = vmax.xlane.f32.xlu0 %v1187
        %v1189 = vpop.xlane.xlu0 %1188
        %v1190 = vsub.f32 %v1182, %v1189
        %v1191 = vmul.f32 %v1190, 1.442695
        %v1192 = vpow.pop %v1191
        %v1193 = vsel %vm561, %v1192, 0.0
        %1194 = vadd.xlane.f32.xlu0 %v1193
        %v1195 = vpop.xlane.xlu0 %1194
        %v1196 = vpack.c.bf16 %v1192, %v1192
        %1197 = vrot.lane.b32.xlu0 %v1086, 56
        %v1198 = vpop.permute.xlu0 %1197
        %v1200 = vsel %vm561, %v1196, 0
        %v1203 = vsel %vm624, %v1198, 0
        %1205 = vmatprep.subr.bf16.mxu0 0
        %1206 = vmatpush1.bf16.msra.mxu0 0
        %1207 = vmatprep.subr.bf16.mxu0 0
        %1208 = vmatpush1.bf16.msra.mxu0 0
        %1209 = vmatprep.subr.bf16.mxu0 0
        %1210 = vmatpush1.bf16.msra.mxu0 0
        %1211 = vmatprep.subr.bf16.mxu0 0
        %1212 = vmatpush1.bf16.msra.mxu0 0
        %1213 = vmatprep.subr.bf16.mxu0 0
        %1214 = vmatpush1.bf16.msra.mxu0 0
        %1215 = vmatprep.subr.bf16.mxu0 0
        %1216 = vmatpush1.bf16.msra.mxu0 0
        %1217 = vmatprep.subr.bf16.mxu0 0
        %1218 = vmatpush1.bf16.msra.mxu0 0
        %1219 = vmatprep.subr.bf16.mxu0 0
        %1220 = vmatpush1.bf16.msra.mxu0 %v1203
        %1221 = vmatprep.subr.bf16.mxu0 0
        %1222 = vmatpush2.bf16.msra.mxu0 0
        %1223 = vmatprep.subr.bf16.mxu0 0
        %1224 = vmatpush2.bf16.msra.mxu0 0
        %1225 = vmatprep.subr.bf16.mxu0 0
        %1226 = vmatpush2.bf16.msra.mxu0 0
        %1227 = vmatprep.subr.bf16.mxu0 0
        %1228 = vmatpush2.bf16.msra.mxu0 0
        %1229 = vmatprep.subr.bf16.mxu0 0
        %1230 = vmatpush2.bf16.msra.mxu0 0
        %1231 = vmatprep.subr.bf16.mxu0 0
        %1232 = vmatpush2.bf16.msra.mxu0 0
        %1233 = vmatprep.subr.bf16.mxu0 0
        %1234 = vmatpush2.bf16.msra.mxu0 0
        %1235 = vmatprep.subr.bf16.mxu0 0
        %1236 = vmatpush2.bf16.msra.mxu0 0
        %1237 = vmatprep.mubr.bf16.mxu0 0
        %1238 = vmatmul.mubr.bf16.gmra.mxu0 %v1200
        %v1239 = vpop.f32.mrf.mxu0
        %v1240 = vadd.f32 0.0, %v1239
        %v1241 = vpop.f32.mrf.mxu0
        %v1242 = vpop.f32.mrf.mxu0
        %v1243 = vpop.f32.mrf.mxu0
        %1244 = vdwg.mxu0
        %v1245 = vrcp.pop %v1195
        %v1246 = vmul.f32 %v1240, %v1245
        %1247 = vrot.lane.b32.xlu0 %v1026, 112
        %v1248 = vpop.permute.xlu0 %1247
        %1249 = vrot.lane.b32.xlu0 %v1027, 80
        %v1250 = vpop.permute.xlu0 %1249
        %v1252 = vsel %vm561, %v1248, 0
        %v1255 = vsel %vm561, %v1250, 0
        %1257 = vmatprep.subr.bf16.mxu0 0
        %1258 = vmatpush1.bf16.xpose.msra.mxu0 0
        %1259 = vmatprep.subr.bf16.mxu0 0
        %1260 = vmatpush1.bf16.xpose.msra.mxu0 0
        %1261 = vmatprep.subr.bf16.mxu0 0
        %1262 = vmatpush1.bf16.xpose.msra.mxu0 0
        %1263 = vmatprep.subr.bf16.mxu0 0
        %1264 = vmatpush1.bf16.xpose.msra.mxu0 0
        %1265 = vmatprep.subr.bf16.mxu0 0
        %1266 = vmatpush1.bf16.xpose.msra.mxu0 0
        %1267 = vmatprep.subr.bf16.mxu0 0
        %1268 = vmatpush1.bf16.xpose.msra.mxu0 0
        %1269 = vmatprep.subr.bf16.mxu0 0
        %1270 = vmatpush1.bf16.xpose.msra.mxu0 0
        %1271 = vmatprep.subr.bf16.mxu0 0
        %1272 = vmatpush1.bf16.xpose.msra.mxu0 %v1255
        %1273 = vmatprep.subr.bf16.mxu0 0
        %1274 = vmatpush2.bf16.xpose.msra.mxu0 0
        %1275 = vmatprep.subr.bf16.mxu0 0
        %1276 = vmatpush2.bf16.xpose.msra.mxu0 0
        %1277 = vmatprep.subr.bf16.mxu0 0
        %1278 = vmatpush2.bf16.xpose.msra.mxu0 0
        %1279 = vmatprep.subr.bf16.mxu0 0
        %1280 = vmatpush2.bf16.xpose.msra.mxu0 0
        %1281 = vmatprep.subr.bf16.mxu0 0
        %1282 = vmatpush2.bf16.xpose.msra.mxu0 0
        %1283 = vmatprep.subr.bf16.mxu0 0
        %1284 = vmatpush2.bf16.xpose.msra.mxu0 0
        %1285 = vmatprep.subr.bf16.mxu0 0
        %1286 = vmatpush2.bf16.xpose.msra.mxu0 0
        %1287 = vmatprep.subr.bf16.mxu0 0
        %1288 = vmatpush2.bf16.xpose.msra.mxu0 0
        %1289 = vmatprep.mubr.bf16.mxu0 0
        %1290 = vmatmul.mubr.bf16.gmra.mxu0 %v1252
        %v1291 = vpop.f32.mrf.mxu0
        %v1292 = vadd.f32 %v1024, %v1291
        %v1293 = vpop.f32.mrf.mxu0
        %v1294 = vpop.f32.mrf.mxu0
        %v1295 = vpop.f32.mrf.mxu0
        %1296 = vdwg.mxu0
        %v1297 = vsel %vm561, %v1292, -inf
        %1298 = vmax.xlane.f32.xlu0 %v1297
        %v1299 = vpop.xlane.xlu0 %1298
        %v1300 = vsub.f32 %v1292, %v1299
        %v1301 = vmul.f32 %v1300, 1.442695
        %v1302 = vpow.pop %v1301
        %v1303 = vsel %vm561, %v1302, 0.0
        %1304 = vadd.xlane.f32.xlu0 %v1303
        %v1305 = vpop.xlane.xlu0 %1304
        %v1306 = vpack.c.bf16 %v1302, %v1302
        %1307 = vrot.lane.b32.xlu0 %v1086, 48
        %v1308 = vpop.permute.xlu0 %1307
        %v1310 = vsel %vm561, %v1306, 0
        %v1313 = vsel %vm624, %v1308, 0
        %1315 = vmatprep.subr.bf16.mxu0 0
        %1316 = vmatpush1.bf16.msra.mxu0 0
        %1317 = vmatprep.subr.bf16.mxu0 0
        %1318 = vmatpush1.bf16.msra.mxu0 0
        %1319 = vmatprep.subr.bf16.mxu0 0
        %1320 = vmatpush1.bf16.msra.mxu0 0
        %1321 = vmatprep.subr.bf16.mxu0 0
        %1322 = vmatpush1.bf16.msra.mxu0 0
        %1323 = vmatprep.subr.bf16.mxu0 0
        %1324 = vmatpush1.bf16.msra.mxu0 0
        %1325 = vmatprep.subr.bf16.mxu0 0
        %1326 = vmatpush1.bf16.msra.mxu0 0
        %1327 = vmatprep.subr.bf16.mxu0 0
        %1328 = vmatpush1.bf16.msra.mxu0 0
        %1329 = vmatprep.subr.bf16.mxu0 0
        %1330 = vmatpush1.bf16.msra.mxu0 %v1313
        %1331 = vmatprep.subr.bf16.mxu0 0
        %1332 = vmatpush2.bf16.msra.mxu0 0
        %1333 = vmatprep.subr.bf16.mxu0 0
        %1334 = vmatpush2.bf16.msra.mxu0 0
        %1335 = vmatprep.subr.bf16.mxu0 0
        %1336 = vmatpush2.bf16.msra.mxu0 0
        %1337 = vmatprep.subr.bf16.mxu0 0
        %1338 = vmatpush2.bf16.msra.mxu0 0
        %1339 = vmatprep.subr.bf16.mxu0 0
        %1340 = vmatpush2.bf16.msra.mxu0 0
        %1341 = vmatprep.subr.bf16.mxu0 0
        %1342 = vmatpush2.bf16.msra.mxu0 0
        %1343 = vmatprep.subr.bf16.mxu0 0
        %1344 = vmatpush2.bf16.msra.mxu0 0
        %1345 = vmatprep.subr.bf16.mxu0 0
        %1346 = vmatpush2.bf16.msra.mxu0 0
        %1347 = vmatprep.mubr.bf16.mxu0 0
        %1348 = vmatmul.mubr.bf16.gmra.mxu0 %v1310
        %v1349 = vpop.f32.mrf.mxu0
        %v1350 = vadd.f32 0.0, %v1349
        %v1351 = vpop.f32.mrf.mxu0
        %v1352 = vpop.f32.mrf.mxu0
        %v1353 = vpop.f32.mrf.mxu0
        %1354 = vdwg.mxu0
        %v1355 = vrcp.pop %v1305
        %v1356 = vmul.f32 %v1350, %v1355
        %1357 = vrot.lane.b32.xlu0 %v1026, 104
        %v1358 = vpop.permute.xlu0 %1357
        %1359 = vrot.lane.b32.xlu0 %v1027, 72
        %v1360 = vpop.permute.xlu0 %1359
        %v1362 = vsel %vm561, %v1358, 0
        %v1365 = vsel %vm561, %v1360, 0
        %1367 = vmatprep.subr.bf16.mxu0 0
        %1368 = vmatpush1.bf16.xpose.msra.mxu0 0
        %1369 = vmatprep.subr.bf16.mxu0 0
        %1370 = vmatpush1.bf16.xpose.msra.mxu0 0
        %1371 = vmatprep.subr.bf16.mxu0 0
        %1372 = vmatpush1.bf16.xpose.msra.mxu0 0
        %1373 = vmatprep.subr.bf16.mxu0 0
        %1374 = vmatpush1.bf16.xpose.msra.mxu0 0
        %1375 = vmatprep.subr.bf16.mxu0 0
        %1376 = vmatpush1.bf16.xpose.msra.mxu0 0
        %1377 = vmatprep.subr.bf16.mxu0 0
        %1378 = vmatpush1.bf16.xpose.msra.mxu0 0
        %1379 = vmatprep.subr.bf16.mxu0 0
        %1380 = vmatpush1.bf16.xpose.msra.mxu0 0
        %1381 = vmatprep.subr.bf16.mxu0 0
        %1382 = vmatpush1.bf16.xpose.msra.mxu0 %v1365
        %1383 = vmatprep.subr.bf16.mxu0 0
        %1384 = vmatpush2.bf16.xpose.msra.mxu0 0
        %1385 = vmatprep.subr.bf16.mxu0 0
        %1386 = vmatpush2.bf16.xpose.msra.mxu0 0
        %1387 = vmatprep.subr.bf16.mxu0 0
        %1388 = vmatpush2.bf16.xpose.msra.mxu0 0
        %1389 = vmatprep.subr.bf16.mxu0 0
        %1390 = vmatpush2.bf16.xpose.msra.mxu0 0
        %1391 = vmatprep.subr.bf16.mxu0 0
        %1392 = vmatpush2.bf16.xpose.msra.mxu0 0
        %1393 = vmatprep.subr.bf16.mxu0 0
        %1394 = vmatpush2.bf16.xpose.msra.mxu0 0
        %1395 = vmatprep.subr.bf16.mxu0 0
        %1396 = vmatpush2.bf16.xpose.msra.mxu0 0
        %1397 = vmatprep.subr.bf16.mxu0 0
        %1398 = vmatpush2.bf16.xpose.msra.mxu0 0
        %1399 = vmatprep.mubr.bf16.mxu0 0
        %1400 = vmatmul.mubr.bf16.gmra.mxu0 %v1362
        %v1401 = vpop.f32.mrf.mxu0
        %v1402 = vadd.f32 %v1024, %v1401
        %v1403 = vpop.f32.mrf.mxu0
        %v1404 = vpop.f32.mrf.mxu0
        %v1405 = vpop.f32.mrf.mxu0
        %1406 = vdwg.mxu0
        %v1407 = vsel %vm561, %v1402, -inf
        %1408 = vmax.xlane.f32.xlu0 %v1407
        %v1409 = vpop.xlane.xlu0 %1408
        %v1410 = vsub.f32 %v1402, %v1409
        %v1411 = vmul.f32 %v1410, 1.442695
        %v1412 = vpow.pop %v1411
        %v1413 = vsel %vm561, %v1412, 0.0
        %1414 = vadd.xlane.f32.xlu0 %v1413
        %v1415 = vpop.xlane.xlu0 %1414
        %v1416 = vpack.c.bf16 %v1412, %v1412
        %1417 = vrot.lane.b32.xlu0 %v1086, 40
        %v1418 = vpop.permute.xlu0 %1417
        %v1420 = vsel %vm561, %v1416, 0
        %v1423 = vsel %vm624, %v1418, 0
        %1425 = vmatprep.subr.bf16.mxu0 0
        %1426 = vmatpush1.bf16.msra.mxu0 0
        %1427 = vmatprep.subr.bf16.mxu0 0
        %1428 = vmatpush1.bf16.msra.mxu0 0
        %1429 = vmatprep.subr.bf16.mxu0 0
        %1430 = vmatpush1.bf16.msra.mxu0 0
        %1431 = vmatprep.subr.bf16.mxu0 0
        %1432 = vmatpush1.bf16.msra.mxu0 0
        %1433 = vmatprep.subr.bf16.mxu0 0
        %1434 = vmatpush1.bf16.msra.mxu0 0
        %1435 = vmatprep.subr.bf16.mxu0 0
        %1436 = vmatpush1.bf16.msra.mxu0 0
        %1437 = vmatprep.subr.bf16.mxu0 0
        %1438 = vmatpush1.bf16.msra.mxu0 0
        %1439 = vmatprep.subr.bf16.mxu0 0
        %1440 = vmatpush1.bf16.msra.mxu0 %v1423
        %1441 = vmatprep.subr.bf16.mxu0 0
        %1442 = vmatpush2.bf16.msra.mxu0 0
        %1443 = vmatprep.subr.bf16.mxu0 0
        %1444 = vmatpush2.bf16.msra.mxu0 0
        %1445 = vmatprep.subr.bf16.mxu0 0
        %1446 = vmatpush2.bf16.msra.mxu0 0
        %1447 = vmatprep.subr.bf16.mxu0 0
        %1448 = vmatpush2.bf16.msra.mxu0 0
        %1449 = vmatprep.subr.bf16.mxu0 0
        %1450 = vmatpush2.bf16.msra.mxu0 0
        %1451 = vmatprep.subr.bf16.mxu0 0
        %1452 = vmatpush2.bf16.msra.mxu0 0
        %1453 = vmatprep.subr.bf16.mxu0 0
        %1454 = vmatpush2.bf16.msra.mxu0 0
        %1455 = vmatprep.subr.bf16.mxu0 0
        %1456 = vmatpush2.bf16.msra.mxu0 0
        %1457 = vmatprep.mubr.bf16.mxu0 0
        %1458 = vmatmul.mubr.bf16.gmra.mxu0 %v1420
        %v1459 = vpop.f32.mrf.mxu0
        %v1460 = vadd.f32 0.0, %v1459
        %v1461 = vpop.f32.mrf.mxu0
        %v1462 = vpop.f32.mrf.mxu0
        %v1463 = vpop.f32.mrf.mxu0
        %1464 = vdwg.mxu0
        %v1465 = vrcp.pop %v1415
        %v1466 = vmul.f32 %v1460, %v1465
        %1468 = vrot.lane.b32.xlu0 %v1246, 8
        %v1469 = vpop.permute.xlu0 %1468
        %1472 = vrot.lane.b32.xlu0 %v1356, 16
        %v1473 = vpop.permute.xlu0 %1472
        %1476 = vrot.lane.b32.xlu0 %v1466, 24
        %v1477 = vpop.permute.xlu0 %1476
        %v1479 = vsel %vm561, %v1136, %v1469
        %v1480 = vsel %vm1014, %v1479, %v1473
        %v1481 = vsel %vm1016, %v1480, %v1477
        %v1482 = vpack.c.bf16 %v1481, %v1017
        %v1483 = vld [vmem:[%s425] sm:$0xf]
        %v1484 = vld [vmem:[%s425 + $0x4] sm:$0xf]
        %v1485 = vld [vmem:[%s425 + $0x8] sm:$0xf]
        %v1486 = vld [vmem:[%s425 + $0xc] sm:$0xf]
        %v1487 = vlaneseq
        %v1488 = vshrl.u32 %v1487, 7
        %v1489 = vsub.s32 3, %v1488
        %v1490 = vrot.slane %v457, %v1489
        %v1495 = vunpack.c.l.b16 %v1483
        %v1496 = vunpack.c.l.b16 %v1484
        %v1497 = vunpack.c.l.b16 %v1485
        %v1498 = vunpack.c.l.b16 %v1486
        %v1499 = vpack.c.b16 %v1496, %v1495
        %v1500 = vpack.c.b16 %v1498, %v1497
        %v1504 = vsel %vm477, %v1482, 0
        %1506 = vmatprep.subr.bf16.mxu0 0
        %1507 = vmatpush1.bf16.msra.mxu0 0
        %1508 = vmatprep.subr.bf16.mxu0 0
        %1509 = vmatpush1.bf16.msra.mxu0 0
        %1510 = vmatprep.subr.bf16.mxu0 0
        %1511 = vmatpush1.bf16.msra.mxu0 0
        %1512 = vmatprep.subr.bf16.mxu0 0
        %1513 = vmatpush1.bf16.msra.mxu0 0
        %1514 = vmatprep.subr.bf16.mxu0 0
        %1515 = vmatpush1.bf16.msra.mxu0 0
        %1516 = vmatprep.subr.bf16.mxu0 0
        %1517 = vmatpush1.bf16.msra.mxu0 0
        %1518 = vmatprep.subr.bf16.mxu0 0
        %1519 = vmatpush1.bf16.msra.mxu0 %v1500
        %1520 = vmatprep.subr.bf16.mxu0 0
        %1521 = vmatpush1.bf16.msra.mxu0 %v1499
        %1522 = vmatprep.subr.bf16.mxu0 0
        %1523 = vmatpush2.bf16.msra.mxu0 0
        %1524 = vmatprep.subr.bf16.mxu0 0
        %1525 = vmatpush2.bf16.msra.mxu0 0
        %1526 = vmatprep.subr.bf16.mxu0 0
        %1527 = vmatpush2.bf16.msra.mxu0 0
        %1528 = vmatprep.subr.bf16.mxu0 0
        %1529 = vmatpush2.bf16.msra.mxu0 0
        %1530 = vmatprep.subr.bf16.mxu0 0
        %1531 = vmatpush2.bf16.msra.mxu0 0
        %1532 = vmatprep.subr.bf16.mxu0 0
        %1533 = vmatpush2.bf16.msra.mxu0 0
        %1534 = vmatprep.subr.bf16.mxu0 0
        %1535 = vmatpush2.bf16.msra.mxu0 0
        %1536 = vmatprep.subr.bf16.mxu0 0
        %1537 = vmatpush2.bf16.msra.mxu0 0
        %1538 = vmatprep.mubr.bf16.mxu0 0
        %1539 = vmatmul.mubr.bf16.gmra.mxu0 %v1504
        %v1540 = vpop.f32.mrf.mxu0
        %v1541 = vadd.f32 %v1490, %v1540
        %v1542 = vpop.f32.mrf.mxu0
        %v1543 = vpop.f32.mrf.mxu0
        %v1544 = vadd.f32 %v1490, %v1543
        %v1545 = vpop.f32.mrf.mxu0
        %1546 = vdwg.mxu0
        %v1547 = vadd.f32 %v455, %v1541
        %v1548 = vadd.f32 %v456, %v1544
        %v1549 = vsel %vm477, %v1547, 0.0
        %1550 = vadd.xlane.f32.xlu0 %v1549
        %v1551 = vpop.xlane.xlu0 %1550
        %v1552 = vsel %vm477, %v1548, 0.0
        %1553 = vadd.xlane.f32.xlu0 %v1552
        %v1554 = vpop.xlane.xlu0 %1553
        %v1555 = vrcp.pop 32.0
        %v1556 = vmul.f32 %v1551, %v1555
        %v1557 = vmul.f32 %v1554, %v1555
        %v1558 = vsub.f32 %v1547, %v1556
        %v1559 = vsub.f32 %v1548, %v1557
        %v1560 = vmul.f32 %v1558, %v1558
        %v1561 = vmul.f32 %v1559, %v1559
        %v1562 = vsel %vm477, %v1560, 0.0
        %1563 = vadd.xlane.f32.xlu0 %v1562
        %v1564 = vpop.xlane.xlu0 %1563
        %v1565 = vsel %vm477, %v1561, 0.0
        %1566 = vadd.xlane.f32.xlu0 %v1565
        %v1567 = vpop.xlane.xlu0 %1566
        %v1568 = vmul.f32 %v1564, %v1555
        %v1569 = vmul.f32 %v1567, %v1555
        %v1570 = vadd.f32 %v1568, 1e-05
        %v1571 = vadd.f32 %v1569, 1e-05
        %v1572 = vrsqrt.pop %v1570
        %v1573 = vrsqrt.pop %v1571
        %v1574 = vmul.f32 %v1558, %v1572
        %v1575 = vmul.f32 %v1559, %v1573
        %v1576 = vlaneseq
        %v1577 = vshrl.u32 %v1576, 7
        %v1578 = vsub.s32 4, %v1577
        %v1579 = vrot.slane %v457, %v1578
        %v1580 = vmul.f32 %v1574, %v1579
        %v1581 = vmul.f32 %v1575, %v1579
        %v1582 = vlaneseq
        %v1583 = vshrl.u32 %v1582, 7
        %v1584 = vsub.s32 5, %v1583
        %v1585 = vrot.slane %v457, %v1584
        %v1586 = vadd.f32 %v1580, %v1585
        %v1587 = vadd.f32 %v1581, %v1585
        %v1588 = vpack.c.bf16 %v1587, %v1586
        %v1589 = vld [vmem:[%s430] sm:$0xf]
        %v1590 = vld [vmem:[%s430 + $0x4] sm:$0xf]
        %v1591 = vld [vmem:[%s430 + $0x8] sm:$0xf]
        %v1592 = vld [vmem:[%s430 + $0xc] sm:$0xf]
        %v1594 = vlaneseq
        %v1595 = vshrl.u32 %v1594, 7
        %v1596 = vsub.s32 0, %v1595
        %v1597 = vrot.slane %v459, %v1596
        %v1603 = vunpack.c.l.b16 %v1589
        %v1604 = vunpack.c.l.b16 %v1590
        %v1605 = vunpack.c.l.b16 %v1591
        %v1606 = vunpack.c.l.b16 %v1592
        %v1607 = vpack.c.b16 %v1604, %v1603
        %v1608 = vpack.c.b16 %v1606, %v1605
        %v1612 = vsel %vm477, %v1588, 0
        %1614 = vmatprep.subr.bf16.mxu0 0
        %1615 = vmatpush1.bf16.msra.mxu0 0
        %1616 = vmatprep.subr.bf16.mxu0 0
        %1617 = vmatpush1.bf16.msra.mxu0 0
        %1618 = vmatprep.subr.bf16.mxu0 0
        %1619 = vmatpush1.bf16.msra.mxu0 0
        %1620 = vmatprep.subr.bf16.mxu0 0
        %1621 = vmatpush1.bf16.msra.mxu0 0
        %1622 = vmatprep.subr.bf16.mxu0 0
        %1623 = vmatpush1.bf16.msra.mxu0 0
        %1624 = vmatprep.subr.bf16.mxu0 0
        %1625 = vmatpush1.bf16.msra.mxu0 0
        %1626 = vmatprep.subr.bf16.mxu0 0
        %1627 = vmatpush1.bf16.msra.mxu0 %v1608
        %1628 = vmatprep.subr.bf16.mxu0 0
        %1629 = vmatpush1.bf16.msra.mxu0 %v1607
        %1630 = vmatprep.subr.bf16.mxu0 0
        %1631 = vmatpush2.bf16.msra.mxu0 0
        %1632 = vmatprep.subr.bf16.mxu0 0
        %1633 = vmatpush2.bf16.msra.mxu0 0
        %1634 = vmatprep.subr.bf16.mxu0 0
        %1635 = vmatpush2.bf16.msra.mxu0 0
        %1636 = vmatprep.subr.bf16.mxu0 0
        %1637 = vmatpush2.bf16.msra.mxu0 0
        %1638 = vmatprep.subr.bf16.mxu0 0
        %1639 = vmatpush2.bf16.msra.mxu0 0
        %1640 = vmatprep.subr.bf16.mxu0 0
        %1641 = vmatpush2.bf16.msra.mxu0 0
        %1642 = vmatprep.subr.bf16.mxu0 0
        %1643 = vmatpush2.bf16.msra.mxu0 0
        %1644 = vmatprep.subr.bf16.mxu0 0
        %1645 = vmatpush2.bf16.msra.mxu0 0
        %1646 = vmatprep.mubr.bf16.mxu0 0
        %1647 = vmatmul.mubr.bf16.gmra.mxu0 %v1612
        %v1648 = vpop.f32.mrf.mxu0
        %v1649 = vadd.f32 %v1597, %v1648
        %v1650 = vpop.f32.mrf.mxu0
        %v1651 = vpop.f32.mrf.mxu0
        %v1652 = vadd.f32 %v1597, %v1651
        %v1653 = vpop.f32.mrf.mxu0
        %1654 = vdwg.mxu0
        %v1655 = vmax.f32 %v1649, 0.0
        %v1656 = vmax.f32 %v1652, 0.0
        %v1657 = vpack.c.bf16 %v1656, %v1655
        %v1658 = vld [vmem:[%s435] sm:$0xf]
        %v1659 = vld [vmem:[%s435 + $0x4] sm:$0xf]
        %v1660 = vld [vmem:[%s435 + $0x8] sm:$0xf]
        %v1661 = vld [vmem:[%s435 + $0xc] sm:$0xf]
        %v1662 = vld [vmem:[%s435 + $0x10] sm:$0xf]
        %v1663 = vld [vmem:[%s435 + $0x14] sm:$0xf]
        %v1664 = vld [vmem:[%s435 + $0x18] sm:$0xf]
        %v1665 = vld [vmem:[%s435 + $0x1c] sm:$0xf]
        %v1666 = vld [vmem:[%s435 + $0x20] sm:$0xf]
        %v1667 = vld [vmem:[%s435 + $0x24] sm:$0xf]
        %v1668 = vld [vmem:[%s435 + $0x28] sm:$0xf]
        %v1669 = vld [vmem:[%s435 + $0x2c] sm:$0xf]
        %v1670 = vld [vmem:[%s435 + $0x30] sm:$0xf]
        %v1671 = vld [vmem:[%s435 + $0x34] sm:$0xf]
        %v1672 = vld [vmem:[%s435 + $0x38] sm:$0xf]
        %v1673 = vld [vmem:[%s435 + $0x3c] sm:$0xf]
        %v1674 = vlaneseq
        %v1675 = vshrl.u32 %v1674, 7
        %v1676 = vsub.s32 6, %v1675
        %v1677 = vrot.slane %v457, %v1676
        %v1694 = vunpack.c.l.b16 %v1658
        %v1695 = vunpack.c.l.b16 %v1659
        %v1696 = vunpack.c.l.b16 %v1660
        %v1697 = vunpack.c.l.b16 %v1661
        %v1698 = vunpack.c.l.b16 %v1662
        %v1699 = vunpack.c.l.b16 %v1663
        %v1700 = vunpack.c.l.b16 %v1664
        %v1701 = vunpack.c.l.b16 %v1665
        %v1702 = vunpack.c.l.b16 %v1666
        %v1703 = vunpack.c.l.b16 %v1667
        %v1704 = vunpack.c.l.b16 %v1668
        %v1705 = vunpack.c.l.b16 %v1669
        %v1706 = vunpack.c.l.b16 %v1670
        %v1707 = vunpack.c.l.b16 %v1671
        %v1708 = vunpack.c.l.b16 %v1672
        %v1709 = vunpack.c.l.b16 %v1673
        %v1710 = vpack.c.b16 %v1695, %v1694
        %v1711 = vpack.c.b16 %v1697, %v1696
        %v1712 = vpack.c.b16 %v1699, %v1698
        %v1713 = vpack.c.b16 %v1701, %v1700
        %v1714 = vpack.c.b16 %v1703, %v1702
        %v1715 = vpack.c.b16 %v1705, %v1704
        %v1716 = vpack.c.b16 %v1707, %v1706
        %v1717 = vpack.c.b16 %v1709, %v1708
        %1726 = vmatprep.subr.bf16.mxu0 0
        %1727 = vmatpush1.bf16.msra.mxu0 %v1717
        %1728 = vmatprep.subr.bf16.mxu0 0
        %1729 = vmatpush1.bf16.msra.mxu0 %v1716
        %1730 = vmatprep.subr.bf16.mxu0 0
        %1731 = vmatpush1.bf16.msra.mxu0 %v1715
        %1732 = vmatprep.subr.bf16.mxu0 0
        %1733 = vmatpush1.bf16.msra.mxu0 %v1714
        %1734 = vmatprep.subr.bf16.mxu0 0
        %1735 = vmatpush1.bf16.msra.mxu0 %v1713
        %1736 = vmatprep.subr.bf16.mxu0 0
        %1737 = vmatpush1.bf16.msra.mxu0 %v1712
        %1738 = vmatprep.subr.bf16.mxu0 0
        %1739 = vmatpush1.bf16.msra.mxu0 %v1711
        %1740 = vmatprep.subr.bf16.mxu0 0
        %1741 = vmatpush1.bf16.msra.mxu0 %v1710
        %1742 = vmatprep.subr.bf16.mxu0 0
        %1743 = vmatpush2.bf16.msra.mxu0 0
        %1744 = vmatprep.subr.bf16.mxu0 0
        %1745 = vmatpush2.bf16.msra.mxu0 0
        %1746 = vmatprep.subr.bf16.mxu0 0
        %1747 = vmatpush2.bf16.msra.mxu0 0
        %1748 = vmatprep.subr.bf16.mxu0 0
        %1749 = vmatpush2.bf16.msra.mxu0 0
        %1750 = vmatprep.subr.bf16.mxu0 0
        %1751 = vmatpush2.bf16.msra.mxu0 0
        %1752 = vmatprep.subr.bf16.mxu0 0
        %1753 = vmatpush2.bf16.msra.mxu0 0
        %1754 = vmatprep.subr.bf16.mxu0 0
        %1755 = vmatpush2.bf16.msra.mxu0 0
        %1756 = vmatprep.subr.bf16.mxu0 0
        %1757 = vmatpush2.bf16.msra.mxu0 0
        %1758 = vmatprep.mubr.bf16.mxu0 0
        %1759 = vmatmul.mubr.bf16.gmra.mxu0 %v1657
        %v1760 = vpop.f32.mrf.mxu0
        %v1761 = vadd.f32 %v1677, %v1760
        %v1762 = vpop.f32.mrf.mxu0
        %v1763 = vpop.f32.mrf.mxu0
        %v1764 = vadd.f32 %v1677, %v1763
        %v1765 = vpop.f32.mrf.mxu0
        %1766 = vdwg.mxu0
        %v1767 = vadd.f32 %v1586, %v1761
        %v1768 = vadd.f32 %v1587, %v1764
        %v1769 = vsel %vm477, %v1767, 0.0
        %1770 = vadd.xlane.f32.xlu0 %v1769
        %v1771 = vpop.xlane.xlu0 %1770
        %v1772 = vsel %vm477, %v1768, 0.0
        %1773 = vadd.xlane.f32.xlu0 %v1772
        %v1774 = vpop.xlane.xlu0 %1773
        %v1775 = vmul.f32 %v1771, %v1555
        %v1776 = vmul.f32 %v1774, %v1555
        %v1777 = vsub.f32 %v1767, %v1775
        %v1778 = vsub.f32 %v1768, %v1776
        %v1779 = vmul.f32 %v1777, %v1777
        %v1780 = vmul.f32 %v1778, %v1778
        %v1781 = vsel %vm477, %v1779, 0.0
        %1782 = vadd.xlane.f32.xlu0 %v1781
        %v1783 = vpop.xlane.xlu0 %1782
        %v1784 = vsel %vm477, %v1780, 0.0
        %1785 = vadd.xlane.f32.xlu0 %v1784
        %v1786 = vpop.xlane.xlu0 %1785
        %v1787 = vmul.f32 %v1783, %v1555
        %v1788 = vmul.f32 %v1786, %v1555
        %v1789 = vadd.f32 %v1787, 1e-05
        %v1790 = vadd.f32 %v1788, 1e-05
        %v1791 = vrsqrt.pop %v1789
        %v1792 = vrsqrt.pop %v1790
        %v1793 = vmul.f32 %v1777, %v1791
        %v1794 = vmul.f32 %v1778, %v1792
        %v1795 = vlaneseq
        %v1796 = vshrl.u32 %v1795, 7
        %v1797 = vsub.s32 7, %v1796
        %v1798 = vrot.slane %v457, %v1797
        %v1799 = vmul.f32 %v1793, %v1798
        %v1800 = vmul.f32 %v1794, %v1798
        %v1801 = vlaneseq
        %v1802 = vshrl.u32 %v1801, 7
        %v1803 = vsub.s32 0, %v1802
        %v1804 = vrot.slane %v458, %v1803
        %v1805 = vadd.f32 %v1799, %v1804
        %v1806 = vadd.f32 %v1800, %v1804
        %1807 = vst.msk [vmem:[#allocation2] sm:$0xff] %vm477, %v1805
        %1808 = vst.msk [vmem:[#allocation2 + $0x8] sm:$0xff] %vm477, %v1806
        // Predicated region
        $region57: #{tpu_custom_call.1} parent=51 // pred_check
          %p1809 = pneg %p258
        $region58: #{tpu_custom_call.1} parent=51 // pred_check_branch
          %1811 = sbr.rel (%p1809) target = $region60
        $region59: #{tpu_custom_call.1} parent=51 // pred_region
          %s1812 = smul.u32 2, %s24
          %s1814 = ssub.s32 256, 256
          %1815 = vsyncadd [#allocation3], %s1814
          %s1816 = smul.addr %s1812, 128
          %s1817 = scalar_lea.hbm %s8, %s1816
          %s1818 = sshll.u32 [#allocation2], 4
          %s1819 = int_to_ptr.vmem [resolvable:$true] %s1818
          %1824 = dma.vmem_to_hbm [thread:$0]  %s1819, 256, %s1817, [#allocation3], 128, 128, 8
        $region60: #{tpu_custom_call.1} parent=51 // pred_fallthru
          _
        // Predicated region
        $region61: #{tpu_custom_call.1} parent=51 // pred_check
          %p1825 = pneg %p258
        $region62: #{tpu_custom_call.1} parent=51 // pred_check_branch
          %1827 = sbr.rel (%p1825) target = $region64
        $region63: #{tpu_custom_call.1} parent=51 // pred_region
          %1828 = dma.done [#allocation3], 256
        $region64: #{tpu_custom_call.1} parent=51 // pred_fallthru
          _
      $region52: #{tpu_custom_call.1} parent=5 // pred_fallthru
        _
      %p1829 = scmp.le.s32.totalorder 2, %s15
      // Predicated region
      $region65: #{tpu_custom_call.1} parent=5 // pred_check
        %p1830 = pneg %p1829
      $region66: #{tpu_custom_call.1} parent=5 // pred_check_branch
        %1832 = sbr.rel (%p1830) target = $region68
      $region67: #{tpu_custom_call.1} parent=5 // pred_region
        %s1833 = ssub.s32 %s15, 2
      $region68: #{tpu_custom_call.1} parent=5 // pred_fallthru
        _
    $region6: #{tpu_custom_call.1} parent=1 // loop_footer
      %s19 = sadd.s32 1, %s15
    $region7: #{tpu_custom_call.1} parent=1 // loop_footer_branch
      %14 = sbr.rel target = $region3
    $region8: #{tpu_custom_call.1} parent=1 // loop_exit
      _
    %1834 = vsyncpa [#allocation3], 1
    %s1835 = scalar_lea.sflag [#allocation3], 1
    %1836 = vsyncpa %s1835, 1

</llo_original>
